<compile_context>
chip_gen: v5e
topology: v5e:2x2
jax: 0.10.0
libtpu: 0.0.40
codegen_flags: <defaults>
</compile_context>

<pallas_src>
import functools
import math

import jax
import jax.numpy as jnp
from jax.experimental import pallas as pl
from jax.experimental.pallas import tpu as pltpu

LANE = 128     # lane width: pad channel dims to a multiple of this
TILE = 512     # adjacency row/reduction tile (clamped to the padded problem)


def _round_up(x, m):
    return ((x + m - 1) // m) * m


def _pad2d(x, rows, cols):
    return jnp.pad(x, ((0, rows - x.shape[0]), (0, cols - x.shape[1])))


# ---------------------------------------------------------------------------
# Pallas kernel: one SAGEConv layer
# ---------------------------------------------------------------------------
def _sage_layer_kernel(a_ref, xk_ref, xm_ref, inv_deg_ref, w_ref, b_ref,
                       o_ref, acc_ref, *, c_in_p, apply_relu):
    k = pl.program_id(1)
    tm = acc_ref.shape[0]

    @pl.when(k == 0)
    def _init():
        # lanes [:c_in_p]  -> neighbour-sum accumulator (zeroed)
        # lanes [c_in_p:]  -> self/root rows (written once per row block)
        acc_ref[:, 0:c_in_p] = jnp.zeros((tm, c_in_p), jnp.float32)
        acc_ref[:, c_in_p:2 * c_in_p] = xm_ref[...].astype(jnp.float32)

    # Neighbour-count partial sum on the MXU: bf16 x bf16 -> f32 accumulator.
    acc_ref[:, 0:c_in_p] += jnp.dot(a_ref[...], xk_ref[...],
                                    preferred_element_type=jnp.float32)

    @pl.when(k == pl.num_programs(1) - 1)
    def _finalize():
        # mean aggregation = count-sum * 1/deg (per-row f32 scale, VPU).
        acc_ref[:, 0:c_in_p] = acc_ref[:, 0:c_in_p] * inv_deg_ref[...]
        # Fused SAGE update, one lane-dense bf16 MXU call per row block:
        #   out = [agg | x_rows] @ [W_l ; W_r] + b   (+ ReLU on hidden layers)
        feats = acc_ref[...].astype(jnp.bfloat16)
        out = jnp.dot(feats, w_ref[...], preferred_element_type=jnp.float32)
        out = out + b_ref[...]
        if apply_relu:
            out = jnp.maximum(out, 0.0)
        o_ref[...] = out.astype(o_ref.dtype)


def sage_layer(a_p, x_p, inv_deg_p, w_cat, b_p, *, apply_relu, out_dtype,
               tm, tk):
    """One SAGEConv layer on padded inputs.

    a_p:       [N_p, N_p]     bf16 edge counts (row = target, col = source)
    x_p:       [N_p, C_in_p]  bf16 node features (channels padded to 128 lanes)
    inv_deg_p: [N_p, 1]       f32  1/in_degree per target row
    w_cat:     [2*C_in_p, C_out_p] bf16 == [W_l ; W_r], zero-padded
    b_p:       [1, C_out_p]   f32
    returns [N_p, C_out_p] in `out_dtype`.
    """
    n_p = a_p.shape[0]
    c_in_p = x_p.shape[1]
    c_out_p = w_cat.shape[1]
    grid = (n_p // tm, n_p // tk)

    # Advisory cost hint for XLA's scheduler around the custom call.
    flops = 2 * n_p * n_p * c_in_p + 2 * n_p * (2 * c_in_p) * c_out_p
    bytes_accessed = (
        n_p * n_p * 2                               # A stream (bf16)
        + n_p * c_in_p * 2 * (n_p // tm)            # X re-streamed per row block
        + n_p * c_in_p * 2                          # self rows
        + 2 * c_in_p * c_out_p * 2                  # weights
        + n_p * c_out_p * jnp.dtype(out_dtype).itemsize)  # output
    cost = pl.CostEstimate(flops=flops, transcendentals=0,
                           bytes_accessed=bytes_accessed)

    kernel = functools.partial(_sage_layer_kernel, c_in_p=c_in_p,
                               apply_relu=apply_relu)
    return pl.pallas_call(
        kernel,
        out_shape=jax.ShapeDtypeStruct((n_p, c_out_p), out_dtype),
        grid_spec=pltpu.PrefetchScalarGridSpec(
            num_scalar_prefetch=0,
            grid=grid,
            in_specs=[
                # A row/col tile (bf16 counts) — the only O(N^2) stream.
                pl.BlockSpec((tm, tk), lambda i, k: (i, k)),
                # X rows entering the reduction (block index changes with k).
                pl.BlockSpec((tk, c_in_p), lambda i, k: (k, 0)),
                # X rows for the self/root path (constant over k).
                pl.BlockSpec((tm, c_in_p), lambda i, k: (i, 0)),
                # Per-row 1/deg scale (constant over k).
                pl.BlockSpec((tm, 1), lambda i, k: (i, 0)),
                # Fused bf16 weights [W_l ; W_r] and f32 bias (constant).
                pl.BlockSpec((2 * c_in_p, c_out_p), lambda i, k: (0, 0)),
                pl.BlockSpec((1, c_out_p), lambda i, k: (0, 0)),
            ],
            out_specs=pl.BlockSpec((tm, c_out_p), lambda i, k: (i, 0)),
            scratch_shapes=[pltpu.VMEM((tm, 2 * c_in_p), jnp.float32)],
        ),
        compiler_params=pltpu.CompilerParams(
            dimension_semantics=("parallel", "arbitrary"),
            vmem_limit_bytes=32 * 1024 * 1024,
        ),
        cost_estimate=cost,
    )(a_p, x_p, x_p, inv_deg_p, w_cat, b_p)


# ---------------------------------------------------------------------------
# Glue (plain JAX): count adjacency + unbatch / lp pooling
# ---------------------------------------------------------------------------
def _count_adjacency(n, edge_index):
    # C[i, j] = #edges j->i ; inv_deg[i] = 1/max(in_degree(i), 1)
    # (matches PyG mean aggregation: mean over an empty neighbourhood == 0).
    counts = jnp.zeros((n, n), jnp.float32).at[
        edge_index[1], edge_index[0]].add(1.0)
    deg = jax.ops.segment_sum(
        jnp.ones((edge_index.shape[1],), jnp.float32),
        edge_index[1], num_segments=n)
    inv_deg = 1.0 / jnp.maximum(deg, 1.0)
    return counts, inv_deg.reshape(n, 1)


def _pool_graphs(x, batch, lp, num_graphs):
    # xs[g] = (x[g][0] + x[g][1]) / 2 if lp[g] else x[g][0]
    n = x.shape[0]
    counts = jax.ops.segment_sum(jnp.ones((n,), jnp.int32), batch,
                                 num_segments=num_graphs)
    offsets = jnp.concatenate(
        [jnp.zeros((1,), jnp.int32), jnp.cumsum(counts)[:-1].astype(jnp.int32)])
    x0 = x[offsets]
    # clamp the "second node" index inside its own graph so a 1-node graph with
    # lp=True degrades to x0 instead of silently reading a foreign row.
    second = jnp.minimum(offsets + 1, offsets + jnp.maximum(counts - 1, 0))
    x1 = x[second]
    return jnp.where(lp[:, None], (x0 + x1) * 0.5, x0)


# ---------------------------------------------------------------------------
# GraphSAGE forward
# ---------------------------------------------------------------------------
def graph_sage_forward(node_x, edge_index, batch, lp, sage_params, num_graphs):
    n, c_in0 = node_x.shape
    n_layers = len(sage_params)
    c_out_last = sage_params[-1][0].shape[1]

    # Clamp the tile to the (lane-padded) problem so tiny graphs stay cheap;
    # large graphs get the full 512-wide tiles.
    tile = min(TILE, _round_up(n, LANE))
    tm = tk = tile
    n_p = _round_up(n, tile)
    # v7x megacore: keep an even number of row blocks so the "parallel" axis
    # splits evenly across the 2 TensorCores.
    if n_p // tm > 1 and (n_p // tm) % 2 == 1:
        n_p += tm

    # Dense edge-count adjacency (bf16-exact small integers) + f32 inv_deg.
    counts, inv_deg = _count_adjacency(n, edge_index)
    a_p = _pad2d(counts, n_p, n_p).astype(jnp.bfloat16)
    inv_deg_p = _pad2d(inv_deg, n_p, 1)

    # Node features: pad nodes to N_p and channels to 128 lanes, bf16 activations.
    x = _pad2d(node_x.astype(jnp.float32), n_p,
               _round_up(c_in0, LANE)).astype(jnp.bfloat16)

    for li, (w_l, w_r, b) in enumerate(sage_params):
        c_in, c_out = w_l.shape
        c_in_p = _round_up(c_in, LANE)
        c_out_p = _round_up(c_out, LANE)
        assert x.shape[1] == c_in_p
        # Pre-concatenate the SAGE weights (bf16) so the kernel does one fused
        # MXU call per row block.
        w_cat = jnp.concatenate(
            [_pad2d(w_l.astype(jnp.float32), c_in_p, c_out_p),
             _pad2d(w_r.astype(jnp.float32), c_in_p, c_out_p)],
            axis=0).astype(jnp.bfloat16)
        b_p = _pad2d(b.astype(jnp.float32).reshape(1, -1), 1, c_out_p)
        last = li == n_layers - 1
        x = sage_layer(a_p, x, inv_deg_p, w_cat, b_p,
                       apply_relu=not last,
                       out_dtype=jnp.float32 if last else jnp.bfloat16,
                       tm=tm, tk=tk)
        # NOTE: dropout between layers is eval-mode identity.

    x = x[:n, :c_out_last]                          # drop node/channel padding
    return _pool_graphs(x, batch, lp, num_graphs)   # [G, gnn_output]


# Pure-JAX f32 reference (same math, no Pallas / no bf16) for validation.
def graph_sage_reference(node_x, edge_index, batch, lp, sage_params, num_graphs):
    n = node_x.shape[0]
    counts, inv_deg = _count_adjacency(n, edge_index)
    a_norm = counts * inv_deg
    x = node_x.astype(jnp.float32)
    n_layers = len(sage_params)
    for li, (w_l, w_r, b) in enumerate(sage_params):
        x = (a_norm @ x) @ w_l + x @ w_r + b.reshape(1, -1)
        if li < n_layers - 1:
            x = jnp.maximum(x, 0.0)
    return _pool_graphs(x, batch, lp, num_graphs)


# ---------------------------------------------------------------------------
# Driver
# ---------------------------------------------------------------------------
if __name__ == "__main__":
    key = jax.random.PRNGKey(0)
    keys = jax.random.split(key, 8)

    # args (small, consistent with the module)
    gnn_input = 16
    gt_layers = 2
    att_d_model = 32      # hidden channels
    gnn_output = 32
    num_graphs = 2
    nodes_per_graph = 4
    n_nodes = num_graphs * nodes_per_graph

    # graph data: bidirectional ring inside each graph
    node_x = jax.random.normal(keys[0], (n_nodes, gnn_input), dtype=jnp.float32)
    src, dst = [], []
    for g in range(num_graphs):
        base = g * nodes_per_graph
        for k in range(nodes_per_graph):
            a, b = base + k, base + (k + 1) % nodes_per_graph
            src += [a, b]
            dst += [b, a]
    edge_index = jnp.array([src, dst], dtype=jnp.int32)
    batch = jnp.repeat(jnp.arange(num_graphs, dtype=jnp.int32), nodes_per_graph)
    lp = jnp.array([True, False])

    # SAGEConv parameters: W_l (neighbor path, carries the bias), W_r (root path)
    dims = [gnn_input] + [att_d_model] * (gt_layers - 1) + [gnn_output]
    sage_params = []
    kidx = 1
    for li in range(gt_layers):
        cin, cout = dims[li], dims[li + 1]
        w_l = jax.random.normal(keys[kidx], (cin, cout), dtype=jnp.float32); kidx += 1
        w_r = jax.random.normal(keys[kidx], (cin, cout), dtype=jnp.float32); kidx += 1
        b_l = jnp.zeros((cout,), dtype=jnp.float32)
        sage_params.append((w_l, w_r, b_l))

    fwd = jax.jit(graph_sage_forward, static_argnums=(5,))
    out = fwd(node_x, edge_index, batch, lp, sage_params, num_graphs)
    out = jax.block_until_ready(out)

    assert out.shape == (num_graphs, gnn_output), out.shape

    ref = graph_sage_reference(node_x, edge_index, batch, lp, sage_params, num_graphs)
    err = float(jnp.max(jnp.abs(out - ref)))
    scale = float(jnp.max(jnp.abs(ref)))
    assert err <= 0.05 * scale + 0.05, f"mismatch: max|err|={err} scale={scale}"

    print("KERNEL_OK")
</pallas_src>

<mosaic_0001>
module attributes {stable_mosaic.version = 11 : i64} {
  func.func @_sage_layer_kernel(%arg0: i32, %arg1: i32, %arg2: memref<128x128xbf16, #tpu.memory_space<vmem>>, %arg3: memref<128x128xbf16, #tpu.memory_space<vmem>>, %arg4: memref<128x128xbf16, #tpu.memory_space<vmem>>, %arg5: memref<128x1xf32, #tpu.memory_space<vmem>>, %arg6: memref<256x128xbf16, #tpu.memory_space<vmem>>, %arg7: memref<1x128xf32, #tpu.memory_space<vmem>>, %arg8: memref<128x128xbf16, #tpu.memory_space<vmem>>, %arg9: memref<128x256xf32, #tpu.memory_space<vmem>>) attributes {dimension_semantics = [#tpu.dimension_semantics<parallel>, #tpu.dimension_semantics<arbitrary>], iteration_bounds = array<i64: 1, 1>, scalar_prefetch = 0 : i64, scratch_operands = 1 : i64, tpu.core_type = #tpu.core_type<tc>, window_params = [{transform_indices = @transform_0, window_bounds = array<i64: 128, 128>}, {transform_indices = @transform_1, window_bounds = array<i64: 128, 128>}, {transform_indices = @transform_2, window_bounds = array<i64: 128, 128>}, {transform_indices = @transform_3, window_bounds = array<i64: 128, 1>}, {pipeline_mode = #tpu.pipeline_mode<synchronous>, transform_indices = @transform_4, window_bounds = array<i64: 256, 128>}, {pipeline_mode = #tpu.pipeline_mode<synchronous>, transform_indices = @transform_5, window_bounds = array<i64: 1, 128>}, {transform_indices = @transform_6, window_bounds = array<i64: 128, 128>}]} {
    %c0_i32 = arith.constant 0 : i32
    %0 = arith.cmpi eq, %arg1, %c0_i32 : i32
    %1 = arith.extui %0 : i1 to i32
    %c0_i32_0 = arith.constant 0 : i32
    %2 = arith.cmpi ne, %1, %c0_i32_0 : i32
    scf.if %2 {
      %cst_10 = arith.constant 0.000000e+00 : f32
      %12 = vector.broadcast %cst_10 : f32 to vector<128x128xf32>
      %c0_11 = arith.constant 0 : index
      %c0_12 = arith.constant 0 : index
      %13 = vector.load %arg9[%c0_11, %c0_12] : memref<128x256xf32, #tpu.memory_space<vmem>>, vector<128x128xf32>
      tpu.vector_store %arg9[%c0_11, %c0_12], %12 {strides = array<i32>} : memref<128x256xf32, #tpu.memory_space<vmem>>, vector<128x128xf32>,
      %c0_13 = arith.constant 0 : index
      %c0_14 = arith.constant 0 : index
      %14 = vector.load %arg4[%c0_13, %c0_14] : memref<128x128xbf16, #tpu.memory_space<vmem>>, vector<128x128xbf16>
      %15 = arith.extf %14 : vector<128x128xbf16> to vector<128x128xf32>
      %c0_15 = arith.constant 0 : index
      %c128 = arith.constant 128 : index
      %16 = vector.load %arg9[%c0_15, %c128] : memref<128x256xf32, #tpu.memory_space<vmem>>, vector<128x128xf32>
      tpu.vector_store %arg9[%c0_15, %c128], %15 {strides = array<i32>} : memref<128x256xf32, #tpu.memory_space<vmem>>, vector<128x128xf32>,
    } else {
    }
    %c0 = arith.constant 0 : index
    %c0_1 = arith.constant 0 : index
    %3 = vector.load %arg9[%c0, %c0_1] : memref<128x256xf32, #tpu.memory_space<vmem>>, vector<128x128xf32>
    %c0_2 = arith.constant 0 : index
    %c0_3 = arith.constant 0 : index
    %4 = vector.load %arg2[%c0_2, %c0_3] : memref<128x128xbf16, #tpu.memory_space<vmem>>, vector<128x128xbf16>
    %c0_4 = arith.constant 0 : index
    %c0_5 = arith.constant 0 : index
    %5 = vector.load %arg3[%c0_4, %c0_5] : memref<128x128xbf16, #tpu.memory_space<vmem>>, vector<128x128xbf16>
    %cst = arith.constant dense<0.000000e+00> : vector<128x128xf32>
    %6 = tpu.matmul %4, %5, %cst {dimension_numbers = #tpu.dot_dimension_numbers<[1], [0], [0], [1], [0, 0, 1, 1], [], []>} : vector<128x128xbf16>, vector<128x128xbf16>, vector<128x128xf32> -> vector<128x128xf32>
    %7 = arith.addf %3, %6 : vector<128x128xf32>
    %c0_6 = arith.constant 0 : index
    %c0_7 = arith.constant 0 : index
    %8 = vector.load %arg9[%c0_6, %c0_7] : memref<128x256xf32, #tpu.memory_space<vmem>>, vector<128x128xf32>
    tpu.vector_store %arg9[%c0_6, %c0_7], %7 {strides = array<i32>} : memref<128x256xf32, #tpu.memory_space<vmem>>, vector<128x128xf32>,
    %c0_i32_8 = arith.constant 0 : i32
    %9 = arith.cmpi eq, %arg1, %c0_i32_8 : i32
    %10 = arith.extui %9 : i1 to i32
    %c0_i32_9 = arith.constant 0 : i32
    %11 = arith.cmpi ne, %10, %c0_i32_9 : i32
    scf.if %11 {
      %c0_10 = arith.constant 0 : index
      %c0_11 = arith.constant 0 : index
      %12 = vector.load %arg9[%c0_10, %c0_11] : memref<128x256xf32, #tpu.memory_space<vmem>>, vector<128x128xf32>
      %c0_12 = arith.constant 0 : index
      %c0_13 = arith.constant 0 : index
      %13 = vector.load %arg5[%c0_12, %c0_13] : memref<128x1xf32, #tpu.memory_space<vmem>>, vector<128x1xf32>
      %14 = vector.broadcast %13 : vector<128x1xf32> to vector<128x128xf32>
      %15 = arith.mulf %12, %14 : vector<128x128xf32>
      %c0_14 = arith.constant 0 : index
      %c0_15 = arith.constant 0 : index
      %16 = vector.load %arg9[%c0_14, %c0_15] : memref<128x256xf32, #tpu.memory_space<vmem>>, vector<128x128xf32>
      tpu.vector_store %arg9[%c0_14, %c0_15], %15 {strides = array<i32>} : memref<128x256xf32, #tpu.memory_space<vmem>>, vector<128x128xf32>,
      %c0_16 = arith.constant 0 : index
      %c0_17 = arith.constant 0 : index
      %17 = vector.load %arg9[%c0_16, %c0_17] : memref<128x256xf32, #tpu.memory_space<vmem>>, vector<128x256xf32>
      %18 = arith.truncf %17 : vector<128x256xf32> to vector<128x256xbf16>
      %c0_18 = arith.constant 0 : index
      %c0_19 = arith.constant 0 : index
      %19 = vector.load %arg6[%c0_18, %c0_19] : memref<256x128xbf16, #tpu.memory_space<vmem>>, vector<256x128xbf16>
      %cst_20 = arith.constant dense<0.000000e+00> : vector<128x128xf32>
      %20 = tpu.matmul %18, %19, %cst_20 {dimension_numbers = #tpu.dot_dimension_numbers<[1], [0], [0], [1], [0, 0, 1, 1], [], []>} : vector<128x256xbf16>, vector<256x128xbf16>, vector<128x128xf32> -> vector<128x128xf32>
      %c0_21 = arith.constant 0 : index
      %c0_22 = arith.constant 0 : index
      %21 = vector.load %arg7[%c0_21, %c0_22] : memref<1x128xf32, #tpu.memory_space<vmem>>, vector<1x128xf32>
      %22 = vector.broadcast %21 : vector<1x128xf32> to vector<128x128xf32>
      %23 = arith.addf %20, %22 : vector<128x128xf32>
      %cst_23 = arith.constant 0.000000e+00 : f32
      %24 = vector.broadcast %cst_23 : f32 to vector<128x128xf32>
      %25 = arith.maximumf %23, %24 : vector<128x128xf32>
      %26 = arith.truncf %25 : vector<128x128xf32> to vector<128x128xbf16>
      %c0_24 = arith.constant 0 : index
      %c0_25 = arith.constant 0 : index
      %27 = vector.load %arg8[%c0_24, %c0_25] : memref<128x128xbf16, #tpu.memory_space<vmem>>, vector<128x128xbf16>
      tpu.vector_store %arg8[%c0_24, %c0_25], %26 {strides = array<i32>} : memref<128x128xbf16, #tpu.memory_space<vmem>>, vector<128x128xbf16>,
    } else {
    }
    return
  }
  func.func @transform_0(%arg0: i32, %arg1: i32) -> (i32, i32) {
    %c0_i32 = arith.constant 0 : i32
    return %arg0, %arg1 : i32, i32
  }
  func.func @transform_1(%arg0: i32, %arg1: i32) -> (i32, i32) {
    %c0_i32 = arith.constant 0 : i32
    %c0_i32_0 = arith.constant 0 : i32
    return %arg1, %c0_i32 : i32, i32
  }
  func.func @transform_2(%arg0: i32, %arg1: i32) -> (i32, i32) {
    %c0_i32 = arith.constant 0 : i32
    %c0_i32_0 = arith.constant 0 : i32
    return %arg0, %c0_i32 : i32, i32
  }
  func.func @transform_3(%arg0: i32, %arg1: i32) -> (i32, i32) {
    %c0_i32 = arith.constant 0 : i32
    %c0_i32_0 = arith.constant 0 : i32
    return %arg0, %c0_i32 : i32, i32
  }
  func.func @transform_4(%arg0: i32, %arg1: i32) -> (i32, i32) {
    %c0_i32 = arith.constant 0 : i32
    %c0_i32_0 = arith.constant 0 : i32
    %c0_i32_1 = arith.constant 0 : i32
    return %c0_i32, %c0_i32_0 : i32, i32
  }
  func.func @transform_5(%arg0: i32, %arg1: i32) -> (i32, i32) {
    %c0_i32 = arith.constant 0 : i32
    %c0_i32_0 = arith.constant 0 : i32
    %c0_i32_1 = arith.constant 0 : i32
    return %c0_i32, %c0_i32_0 : i32, i32
  }
  func.func @transform_6(%arg0: i32, %arg1: i32) -> (i32, i32) {
    %c0_i32 = arith.constant 0 : i32
    %c0_i32_0 = arith.constant 0 : i32
    return %arg0, %c0_i32 : i32, i32
  }
}

module attributes {stable_mosaic.version = 11 : i64} {
  func.func @_sage_layer_kernel(%arg0: i32, %arg1: i32, %arg2: memref<128x128xbf16, #tpu.memory_space<vmem>>, %arg3: memref<128x128xbf16, #tpu.memory_space<vmem>>, %arg4: memref<128x128xbf16, #tpu.memory_space<vmem>>, %arg5: memref<128x1xf32, #tpu.memory_space<vmem>>, %arg6: memref<256x128xbf16, #tpu.memory_space<vmem>>, %arg7: memref<1x128xf32, #tpu.memory_space<vmem>>, %arg8: memref<128x128xf32, #tpu.memory_space<vmem>>, %arg9: memref<128x256xf32, #tpu.memory_space<vmem>>) attributes {dimension_semantics = [#tpu.dimension_semantics<parallel>, #tpu.dimension_semantics<arbitrary>], iteration_bounds = array<i64: 1, 1>, scalar_prefetch = 0 : i64, scratch_operands = 1 : i64, tpu.core_type = #tpu.core_type<tc>, window_params = [{transform_indices = @transform_0, window_bounds = array<i64: 128, 128>}, {transform_indices = @transform_1, window_bounds = array<i64: 128, 128>}, {transform_indices = @transform_2, window_bounds = array<i64: 128, 128>}, {transform_indices = @transform_3, window_bounds = array<i64: 128, 1>}, {pipeline_mode = #tpu.pipeline_mode<synchronous>, transform_indices = @transform_4, window_bounds = array<i64: 256, 128>}, {pipeline_mode = #tpu.pipeline_mode<synchronous>, transform_indices = @transform_5, window_bounds = array<i64: 1, 128>}, {transform_indices = @transform_6, window_bounds = array<i64: 128, 128>}]} {
    %c0_i32 = arith.constant 0 : i32
    %0 = arith.cmpi eq, %arg1, %c0_i32 : i32
    %1 = arith.extui %0 : i1 to i32
    %c0_i32_0 = arith.constant 0 : i32
    %2 = arith.cmpi ne, %1, %c0_i32_0 : i32
    scf.if %2 {
      %cst_10 = arith.constant 0.000000e+00 : f32
      %12 = vector.broadcast %cst_10 : f32 to vector<128x128xf32>
      %c0_11 = arith.constant 0 : index
      %c0_12 = arith.constant 0 : index
      %13 = vector.load %arg9[%c0_11, %c0_12] : memref<128x256xf32, #tpu.memory_space<vmem>>, vector<128x128xf32>
      tpu.vector_store %arg9[%c0_11, %c0_12], %12 {strides = array<i32>} : memref<128x256xf32, #tpu.memory_space<vmem>>, vector<128x128xf32>,
      %c0_13 = arith.constant 0 : index
      %c0_14 = arith.constant 0 : index
      %14 = vector.load %arg4[%c0_13, %c0_14] : memref<128x128xbf16, #tpu.memory_space<vmem>>, vector<128x128xbf16>
      %15 = arith.extf %14 : vector<128x128xbf16> to vector<128x128xf32>
      %c0_15 = arith.constant 0 : index
      %c128 = arith.constant 128 : index
      %16 = vector.load %arg9[%c0_15, %c128] : memref<128x256xf32, #tpu.memory_space<vmem>>, vector<128x128xf32>
      tpu.vector_store %arg9[%c0_15, %c128], %15 {strides = array<i32>} : memref<128x256xf32, #tpu.memory_space<vmem>>, vector<128x128xf32>,
    } else {
    }
    %c0 = arith.constant 0 : index
    %c0_1 = arith.constant 0 : index
    %3 = vector.load %arg9[%c0, %c0_1] : memref<128x256xf32, #tpu.memory_space<vmem>>, vector<128x128xf32>
    %c0_2 = arith.constant 0 : index
    %c0_3 = arith.constant 0 : index
    %4 = vector.load %arg2[%c0_2, %c0_3] : memref<128x128xbf16, #tpu.memory_space<vmem>>, vector<128x128xbf16>
    %c0_4 = arith.constant 0 : index
    %c0_5 = arith.constant 0 : index
    %5 = vector.load %arg3[%c0_4, %c0_5] : memref<128x128xbf16, #tpu.memory_space<vmem>>, vector<128x128xbf16>
    %cst = arith.constant dense<0.000000e+00> : vector<128x128xf32>
    %6 = tpu.matmul %4, %5, %cst {dimension_numbers = #tpu.dot_dimension_numbers<[1], [0], [0], [1], [0, 0, 1, 1], [], []>} : vector<128x128xbf16>, vector<128x128xbf16>, vector<128x128xf32> -> vector<128x128xf32>
    %7 = arith.addf %3, %6 : vector<128x128xf32>
    %c0_6 = arith.constant 0 : index
    %c0_7 = arith.constant 0 : index
    %8 = vector.load %arg9[%c0_6, %c0_7] : memref<128x256xf32, #tpu.memory_space<vmem>>, vector<128x128xf32>
    tpu.vector_store %arg9[%c0_6, %c0_7], %7 {strides = array<i32>} : memref<128x256xf32, #tpu.memory_space<vmem>>, vector<128x128xf32>,
    %c0_i32_8 = arith.constant 0 : i32
    %9 = arith.cmpi eq, %arg1, %c0_i32_8 : i32
    %10 = arith.extui %9 : i1 to i32
    %c0_i32_9 = arith.constant 0 : i32
    %11 = arith.cmpi ne, %10, %c0_i32_9 : i32
    scf.if %11 {
      %c0_10 = arith.constant 0 : index
      %c0_11 = arith.constant 0 : index
      %12 = vector.load %arg9[%c0_10, %c0_11] : memref<128x256xf32, #tpu.memory_space<vmem>>, vector<128x128xf32>
      %c0_12 = arith.constant 0 : index
      %c0_13 = arith.constant 0 : index
      %13 = vector.load %arg5[%c0_12, %c0_13] : memref<128x1xf32, #tpu.memory_space<vmem>>, vector<128x1xf32>
      %14 = vector.broadcast %13 : vector<128x1xf32> to vector<128x128xf32>
      %15 = arith.mulf %12, %14 : vector<128x128xf32>
      %c0_14 = arith.constant 0 : index
      %c0_15 = arith.constant 0 : index
      %16 = vector.load %arg9[%c0_14, %c0_15] : memref<128x256xf32, #tpu.memory_space<vmem>>, vector<128x128xf32>
      tpu.vector_store %arg9[%c0_14, %c0_15], %15 {strides = array<i32>} : memref<128x256xf32, #tpu.memory_space<vmem>>, vector<128x128xf32>,
      %c0_16 = arith.constant 0 : index
      %c0_17 = arith.constant 0 : index
      %17 = vector.load %arg9[%c0_16, %c0_17] : memref<128x256xf32, #tpu.memory_space<vmem>>, vector<128x256xf32>
      %18 = arith.truncf %17 : vector<128x256xf32> to vector<128x256xbf16>
      %c0_18 = arith.constant 0 : index
      %c0_19 = arith.constant 0 : index
      %19 = vector.load %arg6[%c0_18, %c0_19] : memref<256x128xbf16, #tpu.memory_space<vmem>>, vector<256x128xbf16>
      %cst_20 = arith.constant dense<0.000000e+00> : vector<128x128xf32>
      %20 = tpu.matmul %18, %19, %cst_20 {dimension_numbers = #tpu.dot_dimension_numbers<[1], [0], [0], [1], [0, 0, 1, 1], [], []>} : vector<128x256xbf16>, vector<256x128xbf16>, vector<128x128xf32> -> vector<128x128xf32>
      %c0_21 = arith.constant 0 : index
      %c0_22 = arith.constant 0 : index
      %21 = vector.load %arg7[%c0_21, %c0_22] : memref<1x128xf32, #tpu.memory_space<vmem>>, vector<1x128xf32>
      %22 = vector.broadcast %21 : vector<1x128xf32> to vector<128x128xf32>
      %23 = arith.addf %20, %22 : vector<128x128xf32>
      %c0_23 = arith.constant 0 : index
      %c0_24 = arith.constant 0 : index
      %24 = vector.load %arg8[%c0_23, %c0_24] : memref<128x128xf32, #tpu.memory_space<vmem>>, vector<128x128xf32>
      tpu.vector_store %arg8[%c0_23, %c0_24], %23 {strides = array<i32>} : memref<128x128xf32, #tpu.memory_space<vmem>>, vector<128x128xf32>,
    } else {
    }
    return
  }
  func.func @transform_0(%arg0: i32, %arg1: i32) -> (i32, i32) {
    %c0_i32 = arith.constant 0 : i32
    return %arg0, %arg1 : i32, i32
  }
  func.func @transform_1(%arg0: i32, %arg1: i32) -> (i32, i32) {
    %c0_i32 = arith.constant 0 : i32
    %c0_i32_0 = arith.constant 0 : i32
    return %arg1, %c0_i32 : i32, i32
  }
  func.func @transform_2(%arg0: i32, %arg1: i32) -> (i32, i32) {
    %c0_i32 = arith.constant 0 : i32
    %c0_i32_0 = arith.constant 0 : i32
    return %arg0, %c0_i32 : i32, i32
  }
  func.func @transform_3(%arg0: i32, %arg1: i32) -> (i32, i32) {
    %c0_i32 = arith.constant 0 : i32
    %c0_i32_0 = arith.constant 0 : i32
    return %arg0, %c0_i32 : i32, i32
  }
  func.func @transform_4(%arg0: i32, %arg1: i32) -> (i32, i32) {
    %c0_i32 = arith.constant 0 : i32
    %c0_i32_0 = arith.constant 0 : i32
    %c0_i32_1 = arith.constant 0 : i32
    return %c0_i32, %c0_i32_0 : i32, i32
  }
  func.func @transform_5(%arg0: i32, %arg1: i32) -> (i32, i32) {
    %c0_i32 = arith.constant 0 : i32
    %c0_i32_0 = arith.constant 0 : i32
    %c0_i32_1 = arith.constant 0 : i32
    return %c0_i32, %c0_i32_0 : i32, i32
  }
  func.func @transform_6(%arg0: i32, %arg1: i32) -> (i32, i32) {
    %c0_i32 = arith.constant 0 : i32
    %c0_i32_0 = arith.constant 0 : i32
    return %arg0, %c0_i32 : i32, i32
  }
}

</mosaic_0001>

<llo_original>
// kernel: graph_sage_forward.3
$region0: #{graph_sage_forward.3}
  #allocation0 [shape = 'u32[]', space=smem, size = 0x4, offset = 0x4, fixed_abs, tag = 'smem constant byte address 0x4 - core index']
  #allocation1 [shape = 'u32[72,128]{1,0:T(1,128)}', space=vmem, size = 0x9000, scoped, tag = 'internal scratch']
  #allocation2 [shape = 'f32[128,256]{1,0:T(8,128)}', space=vmem, size = 0x20000, scoped, tag = 'scratch operand']
  %s0 = inlined_call_operand.vmem [shape: bf16[128,128], index: 0, kind: input, shape index: {}]
  %s1 = inlined_call_operand.vmem [shape: bf16[128,128], index: 1, kind: input, shape index: {}, may-alias: {1,2}]
  %s2 = inlined_call_operand.vmem [shape: bf16[128,128], index: 2, kind: input, shape index: {}, may-alias: {1,2}]
  %s3 = inlined_call_operand.vmem [shape: f32[128,1], index: 3, kind: input, shape index: {}]
  %s4 = inlined_call_operand.vmem [shape: bf16[256,128], index: 4, kind: input, shape index: {}]
  %s5 = inlined_call_operand.vmem [shape: f32[1,128], index: 5, kind: input, shape index: {}]
  %s6 = inlined_call_operand.vmem [shape: f32[128,128], index: 6, kind: output, shape index: {}]
  %s7 = sld [smem:[#allocation0]]
  $region42: #{graph_sage_forward.3} parent=0
    _
  %s9 = ssub.s32 1, %s7
  %s10 = scalar_select 0, %s9, %s7
  // Predicated region
  $region2: #{graph_sage_forward.3} parent=0 // pred_check
    _
  $region3: #{graph_sage_forward.3} parent=0 // pred_check_branch
    %12 = sbr.rel (0) target = $region5
  $region4: #{graph_sage_forward.3} parent=0 // pred_region
    _
  $region5: #{graph_sage_forward.3} parent=0 // pred_fallthru
    _
  // Predicated region
  $region6: #{graph_sage_forward.3} parent=0 // pred_check
    _
  $region7: #{graph_sage_forward.3} parent=0 // pred_check_branch
    %14 = sbr.rel (0) target = $region9
  $region8: #{graph_sage_forward.3} parent=0 // pred_region
    _
  $region9: #{graph_sage_forward.3} parent=0 // pred_fallthru
    _
  // Predicated region
  $region10: #{graph_sage_forward.3} parent=0 // pred_check
    _
  $region11: #{graph_sage_forward.3} parent=0 // pred_check_branch
    %16 = sbr.rel (0) target = $region13
  $region12: #{graph_sage_forward.3} parent=0 // pred_region
    _
  $region13: #{graph_sage_forward.3} parent=0 // pred_fallthru
    _
  // Predicated region
  $region14: #{graph_sage_forward.3} parent=0 // pred_check
    _
  $region15: #{graph_sage_forward.3} parent=0 // pred_check_branch
    %18 = sbr.rel (0) target = $region17
  $region16: #{graph_sage_forward.3} parent=0 // pred_region
    _
  $region17: #{graph_sage_forward.3} parent=0 // pred_fallthru
    _
  // Predicated region
  $region18: #{graph_sage_forward.3} parent=0 // pred_check
    _
  $region19: #{graph_sage_forward.3} parent=0 // pred_check_branch
    %20 = sbr.rel (0) target = $region21
  $region20: #{graph_sage_forward.3} parent=0 // pred_region
    _
  $region21: #{graph_sage_forward.3} parent=0 // pred_fallthru
    _
  // Predicated region
  $region22: #{graph_sage_forward.3} parent=0 // pred_check
    _
  $region23: #{graph_sage_forward.3} parent=0 // pred_check_branch
    %22 = sbr.rel (0) target = $region25
  $region24: #{graph_sage_forward.3} parent=0 // pred_region
    _
  $region25: #{graph_sage_forward.3} parent=0 // pred_fallthru
    _
  %p23 = scmp.eq.s32.totalorder 0, 0
  // Predicated region
  $region26: #{graph_sage_forward.3} parent=0 // pred_check
    %p24 = pneg %p23
  $region27: #{graph_sage_forward.3} parent=0 // pred_check_branch
    %26 = sbr.rel (%p24) target = $region29
  $region28: #{graph_sage_forward.3} parent=0 // pred_region
    %27 = vst [vmem:[#allocation2] sm:$0xff] 0.0
    %28 = vst [vmem:[#allocation2 + $0x10] sm:$0xff] 0.0
    %29 = vst [vmem:[#allocation2 + $0x20] sm:$0xff] 0.0
    %30 = vst [vmem:[#allocation2 + $0x30] sm:$0xff] 0.0
    %31 = vst [vmem:[#allocation2 + $0x40] sm:$0xff] 0.0
    %32 = vst [vmem:[#allocation2 + $0x50] sm:$0xff] 0.0
    %33 = vst [vmem:[#allocation2 + $0x60] sm:$0xff] 0.0
    %34 = vst [vmem:[#allocation2 + $0x70] sm:$0xff] 0.0
    %35 = vst [vmem:[#allocation2 + $0x80] sm:$0xff] 0.0
    %36 = vst [vmem:[#allocation2 + $0x90] sm:$0xff] 0.0
    %37 = vst [vmem:[#allocation2 + $0xa0] sm:$0xff] 0.0
    %38 = vst [vmem:[#allocation2 + $0xb0] sm:$0xff] 0.0
    %39 = vst [vmem:[#allocation2 + $0xc0] sm:$0xff] 0.0
    %40 = vst [vmem:[#allocation2 + $0xd0] sm:$0xff] 0.0
    %41 = vst [vmem:[#allocation2 + $0xe0] sm:$0xff] 0.0
    %42 = vst [vmem:[#allocation2 + $0xf0] sm:$0xff] 0.0
    %v43 = vld [vmem:[%s2] sm:$0xf]
    %v44 = vld [vmem:[%s2 + $0x4] sm:$0xf]
    %v45 = vld [vmem:[%s2 + $0x8] sm:$0xf]
    %v46 = vld [vmem:[%s2 + $0xc] sm:$0xf]
    %v47 = vld [vmem:[%s2 + $0x10] sm:$0xf]
    %v48 = vld [vmem:[%s2 + $0x14] sm:$0xf]
    %v49 = vld [vmem:[%s2 + $0x18] sm:$0xf]
    %v50 = vld [vmem:[%s2 + $0x1c] sm:$0xf]
    %v51 = vld [vmem:[%s2 + $0x20] sm:$0xf]
    %v52 = vld [vmem:[%s2 + $0x24] sm:$0xf]
    %v53 = vld [vmem:[%s2 + $0x28] sm:$0xf]
    %v54 = vld [vmem:[%s2 + $0x2c] sm:$0xf]
    %v55 = vld [vmem:[%s2 + $0x30] sm:$0xf]
    %v56 = vld [vmem:[%s2 + $0x34] sm:$0xf]
    %v57 = vld [vmem:[%s2 + $0x38] sm:$0xf]
    %v58 = vld [vmem:[%s2 + $0x3c] sm:$0xf]
    %v59 = vunpack.c.l.bf16 %v43
    %v60 = vunpack.c.l.bf16 %v44
    %v61 = vunpack.c.l.bf16 %v45
    %v62 = vunpack.c.l.bf16 %v46
    %v63 = vunpack.c.l.bf16 %v47
    %v64 = vunpack.c.l.bf16 %v48
    %v65 = vunpack.c.l.bf16 %v49
    %v66 = vunpack.c.l.bf16 %v50
    %v67 = vunpack.c.l.bf16 %v51
    %v68 = vunpack.c.l.bf16 %v52
    %v69 = vunpack.c.l.bf16 %v53
    %v70 = vunpack.c.l.bf16 %v54
    %v71 = vunpack.c.l.bf16 %v55
    %v72 = vunpack.c.l.bf16 %v56
    %v73 = vunpack.c.l.bf16 %v57
    %v74 = vunpack.c.l.bf16 %v58
    %75 = vst [vmem:[#allocation2 + $0x8] sm:$0xff] %v59
    %76 = vst [vmem:[#allocation2 + $0x18] sm:$0xff] %v60
    %77 = vst [vmem:[#allocation2 + $0x28] sm:$0xff] %v61
    %78 = vst [vmem:[#allocation2 + $0x38] sm:$0xff] %v62
    %79 = vst [vmem:[#allocation2 + $0x48] sm:$0xff] %v63
    %80 = vst [vmem:[#allocation2 + $0x58] sm:$0xff] %v64
    %81 = vst [vmem:[#allocation2 + $0x68] sm:$0xff] %v65
    %82 = vst [vmem:[#allocation2 + $0x78] sm:$0xff] %v66
    %83 = vst [vmem:[#allocation2 + $0x88] sm:$0xff] %v67
    %84 = vst [vmem:[#allocation2 + $0x98] sm:$0xff] %v68
    %85 = vst [vmem:[#allocation2 + $0xa8] sm:$0xff] %v69
    %86 = vst [vmem:[#allocation2 + $0xb8] sm:$0xff] %v70
    %87 = vst [vmem:[#allocation2 + $0xc8] sm:$0xff] %v71
    %88 = vst [vmem:[#allocation2 + $0xd8] sm:$0xff] %v72
    %89 = vst [vmem:[#allocation2 + $0xe8] sm:$0xff] %v73
    %90 = vst [vmem:[#allocation2 + $0xf8] sm:$0xff] %v74
  $region29: #{graph_sage_forward.3} parent=0 // pred_fallthru
    _
  %v91 = vld [vmem:[#allocation2] sm:$0xff]
  %v92 = vld [vmem:[#allocation2 + $0x10] sm:$0xff]
  %v93 = vld [vmem:[#allocation2 + $0x20] sm:$0xff]
  %v94 = vld [vmem:[#allocation2 + $0x30] sm:$0xff]
  %v95 = vld [vmem:[#allocation2 + $0x40] sm:$0xff]
  %v96 = vld [vmem:[#allocation2 + $0x50] sm:$0xff]
  %v97 = vld [vmem:[#allocation2 + $0x60] sm:$0xff]
  %v98 = vld [vmem:[#allocation2 + $0x70] sm:$0xff]
  %v99 = vld [vmem:[#allocation2 + $0x80] sm:$0xff]
  %v100 = vld [vmem:[#allocation2 + $0x90] sm:$0xff]
  %v101 = vld [vmem:[#allocation2 + $0xa0] sm:$0xff]
  %v102 = vld [vmem:[#allocation2 + $0xb0] sm:$0xff]
  %v103 = vld [vmem:[#allocation2 + $0xc0] sm:$0xff]
  %v104 = vld [vmem:[#allocation2 + $0xd0] sm:$0xff]
  %v105 = vld [vmem:[#allocation2 + $0xe0] sm:$0xff]
  %v106 = vld [vmem:[#allocation2 + $0xf0] sm:$0xff]
  %v107 = vld [vmem:[%s0] sm:$0xf]
  %v108 = vld [vmem:[%s0 + $0x4] sm:$0xf]
  %v109 = vld [vmem:[%s0 + $0x8] sm:$0xf]
  %v110 = vld [vmem:[%s0 + $0xc] sm:$0xf]
  %v111 = vld [vmem:[%s0 + $0x10] sm:$0xf]
  %v112 = vld [vmem:[%s0 + $0x14] sm:$0xf]
  %v113 = vld [vmem:[%s0 + $0x18] sm:$0xf]
  %v114 = vld [vmem:[%s0 + $0x1c] sm:$0xf]
  %v115 = vld [vmem:[%s0 + $0x20] sm:$0xf]
  %v116 = vld [vmem:[%s0 + $0x24] sm:$0xf]
  %v117 = vld [vmem:[%s0 + $0x28] sm:$0xf]
  %v118 = vld [vmem:[%s0 + $0x2c] sm:$0xf]
  %v119 = vld [vmem:[%s0 + $0x30] sm:$0xf]
  %v120 = vld [vmem:[%s0 + $0x34] sm:$0xf]
  %v121 = vld [vmem:[%s0 + $0x38] sm:$0xf]
  %v122 = vld [vmem:[%s0 + $0x3c] sm:$0xf]
  %v123 = vld [vmem:[%s1] sm:$0xf]
  %v124 = vld [vmem:[%s1 + $0x4] sm:$0xf]
  %v125 = vld [vmem:[%s1 + $0x8] sm:$0xf]
  %v126 = vld [vmem:[%s1 + $0xc] sm:$0xf]
  %v127 = vld [vmem:[%s1 + $0x10] sm:$0xf]
  %v128 = vld [vmem:[%s1 + $0x14] sm:$0xf]
  %v129 = vld [vmem:[%s1 + $0x18] sm:$0xf]
  %v130 = vld [vmem:[%s1 + $0x1c] sm:$0xf]
  %v131 = vld [vmem:[%s1 + $0x20] sm:$0xf]
  %v132 = vld [vmem:[%s1 + $0x24] sm:$0xf]
  %v133 = vld [vmem:[%s1 + $0x28] sm:$0xf]
  %v134 = vld [vmem:[%s1 + $0x2c] sm:$0xf]
  %v135 = vld [vmem:[%s1 + $0x30] sm:$0xf]
  %v136 = vld [vmem:[%s1 + $0x34] sm:$0xf]
  %v137 = vld [vmem:[%s1 + $0x38] sm:$0xf]
  %v138 = vld [vmem:[%s1 + $0x3c] sm:$0xf]
  %v155 = vunpack.c.l.b16 %v107
  %v156 = vunpack.c.l.b16 %v108
  %v157 = vunpack.c.l.b16 %v109
  %v158 = vunpack.c.l.b16 %v110
  %v159 = vunpack.c.l.b16 %v111
  %v160 = vunpack.c.l.b16 %v112
  %v161 = vunpack.c.l.b16 %v113
  %v162 = vunpack.c.l.b16 %v114
  %v163 = vunpack.c.l.b16 %v115
  %v164 = vunpack.c.l.b16 %v116
  %v165 = vunpack.c.l.b16 %v117
  %v166 = vunpack.c.l.b16 %v118
  %v167 = vunpack.c.l.b16 %v119
  %v168 = vunpack.c.l.b16 %v120
  %v169 = vunpack.c.l.b16 %v121
  %v170 = vunpack.c.l.b16 %v122
  %v171 = vpack.c.b16 %v156, %v155
  %v172 = vpack.c.b16 %v158, %v157
  %v173 = vpack.c.b16 %v160, %v159
  %v174 = vpack.c.b16 %v162, %v161
  %v175 = vpack.c.b16 %v164, %v163
  %v176 = vpack.c.b16 %v166, %v165
  %v177 = vpack.c.b16 %v168, %v167
  %v178 = vpack.c.b16 %v170, %v169
  %v203 = vunpack.c.l.b16 %v123
  %v204 = vunpack.c.l.b16 %v124
  %v205 = vunpack.c.l.b16 %v125
  %v206 = vunpack.c.l.b16 %v126
  %v207 = vunpack.c.l.b16 %v127
  %v208 = vunpack.c.l.b16 %v128
  %v209 = vunpack.c.l.b16 %v129
  %v210 = vunpack.c.l.b16 %v130
  %v211 = vunpack.c.l.b16 %v131
  %v212 = vunpack.c.l.b16 %v132
  %v213 = vunpack.c.l.b16 %v133
  %v214 = vunpack.c.l.b16 %v134
  %v215 = vunpack.c.l.b16 %v135
  %v216 = vunpack.c.l.b16 %v136
  %v217 = vunpack.c.l.b16 %v137
  %v218 = vunpack.c.l.b16 %v138
  %v219 = vpack.c.b16 %v204, %v203
  %v220 = vpack.c.b16 %v206, %v205
  %v221 = vpack.c.b16 %v208, %v207
  %v222 = vpack.c.b16 %v210, %v209
  %v223 = vpack.c.b16 %v212, %v211
  %v224 = vpack.c.b16 %v214, %v213
  %v225 = vpack.c.b16 %v216, %v215
  %v226 = vpack.c.b16 %v218, %v217
  %235 = vmatpush.bf16.msra.mxu0 %v226
  %236 = vmatpush.bf16.msra.mxu0 %v225
  %237 = vmatpush.bf16.msra.mxu0 %v224
  %238 = vmatpush.bf16.msra.mxu0 %v223
  %239 = vmatpush.bf16.msra.mxu0 %v222
  %240 = vmatpush.bf16.msra.mxu0 %v221
  %241 = vmatpush.bf16.msra.mxu0 %v220
  %242 = vmatpush.bf16.msra.mxu0 %v219
  %243 = vmatmul.bf16.gmra.mxu0 %v171
  %v244 = vpop.f32.mrf.mxu0
  %v245 = vadd.f32 0.0, %v244
  %v246 = vpop.f32.mrf.mxu0
  %v247 = vadd.f32 0.0, %v246
  %248 = vmatmul.bf16.gmra.mxu0 %v172
  %v249 = vpop.f32.mrf.mxu0
  %v250 = vadd.f32 0.0, %v249
  %v251 = vpop.f32.mrf.mxu0
  %v252 = vadd.f32 0.0, %v251
  %253 = vmatmul.bf16.gmra.mxu0 %v173
  %v254 = vpop.f32.mrf.mxu0
  %v255 = vadd.f32 0.0, %v254
  %v256 = vpop.f32.mrf.mxu0
  %v257 = vadd.f32 0.0, %v256
  %258 = vmatmul.bf16.gmra.mxu0 %v174
  %v259 = vpop.f32.mrf.mxu0
  %v260 = vadd.f32 0.0, %v259
  %v261 = vpop.f32.mrf.mxu0
  %v262 = vadd.f32 0.0, %v261
  %263 = vmatmul.bf16.gmra.mxu0 %v175
  %v264 = vpop.f32.mrf.mxu0
  %v265 = vadd.f32 0.0, %v264
  %v266 = vpop.f32.mrf.mxu0
  %v267 = vadd.f32 0.0, %v266
  %268 = vmatmul.bf16.gmra.mxu0 %v176
  %v269 = vpop.f32.mrf.mxu0
  %v270 = vadd.f32 0.0, %v269
  %v271 = vpop.f32.mrf.mxu0
  %v272 = vadd.f32 0.0, %v271
  %273 = vmatmul.bf16.gmra.mxu0 %v177
  %v274 = vpop.f32.mrf.mxu0
  %v275 = vadd.f32 0.0, %v274
  %v276 = vpop.f32.mrf.mxu0
  %v277 = vadd.f32 0.0, %v276
  %278 = vmatmul.bf16.gmra.mxu0 %v178
  %v279 = vpop.f32.mrf.mxu0
  %v280 = vadd.f32 0.0, %v279
  %v281 = vpop.f32.mrf.mxu0
  %v282 = vadd.f32 0.0, %v281
  %283 = vdwg.mxu0
  %v284 = vadd.f32 %v91, %v245
  %v285 = vadd.f32 %v92, %v247
  %v286 = vadd.f32 %v93, %v250
  %v287 = vadd.f32 %v94, %v252
  %v288 = vadd.f32 %v95, %v255
  %v289 = vadd.f32 %v96, %v257
  %v290 = vadd.f32 %v97, %v260
  %v291 = vadd.f32 %v98, %v262
  %v292 = vadd.f32 %v99, %v265
  %v293 = vadd.f32 %v100, %v267
  %v294 = vadd.f32 %v101, %v270
  %v295 = vadd.f32 %v102, %v272
  %v296 = vadd.f32 %v103, %v275
  %v297 = vadd.f32 %v104, %v277
  %v298 = vadd.f32 %v105, %v280
  %v299 = vadd.f32 %v106, %v282
  %300 = vst [vmem:[#allocation2] sm:$0xff] %v284
  %301 = vst [vmem:[#allocation2 + $0x10] sm:$0xff] %v285
  %302 = vst [vmem:[#allocation2 + $0x20] sm:$0xff] %v286
  %303 = vst [vmem:[#allocation2 + $0x30] sm:$0xff] %v287
  %304 = vst [vmem:[#allocation2 + $0x40] sm:$0xff] %v288
  %305 = vst [vmem:[#allocation2 + $0x50] sm:$0xff] %v289
  %306 = vst [vmem:[#allocation2 + $0x60] sm:$0xff] %v290
  %307 = vst [vmem:[#allocation2 + $0x70] sm:$0xff] %v291
  %308 = vst [vmem:[#allocation2 + $0x80] sm:$0xff] %v292
  %309 = vst [vmem:[#allocation2 + $0x90] sm:$0xff] %v293
  %310 = vst [vmem:[#allocation2 + $0xa0] sm:$0xff] %v294
  %311 = vst [vmem:[#allocation2 + $0xb0] sm:$0xff] %v295
  %312 = vst [vmem:[#allocation2 + $0xc0] sm:$0xff] %v296
  %313 = vst [vmem:[#allocation2 + $0xd0] sm:$0xff] %v297
  %314 = vst [vmem:[#allocation2 + $0xe0] sm:$0xff] %v298
  %315 = vst [vmem:[#allocation2 + $0xf0] sm:$0xff] %v299
  // Predicated region
  $region30: #{graph_sage_forward.3} parent=0 // pred_check
    %p316 = pneg %p23
  $region31: #{graph_sage_forward.3} parent=0 // pred_check_branch
    %318 = sbr.rel (%p316) target = $region33
  $region32: #{graph_sage_forward.3} parent=0 // pred_region
    %v319 = vld [vmem:[#allocation2] sm:$0xff]
    %v320 = vld [vmem:[#allocation2 + $0x10] sm:$0xff]
    %v321 = vld [vmem:[#allocation2 + $0x20] sm:$0xff]
    %v322 = vld [vmem:[#allocation2 + $0x30] sm:$0xff]
    %v323 = vld [vmem:[#allocation2 + $0x40] sm:$0xff]
    %v324 = vld [vmem:[#allocation2 + $0x50] sm:$0xff]
    %v325 = vld [vmem:[#allocation2 + $0x60] sm:$0xff]
    %v326 = vld [vmem:[#allocation2 + $0x70] sm:$0xff]
    %v327 = vld [vmem:[#allocation2 + $0x80] sm:$0xff]
    %v328 = vld [vmem:[#allocation2 + $0x90] sm:$0xff]
    %v329 = vld [vmem:[#allocation2 + $0xa0] sm:$0xff]
    %v330 = vld [vmem:[#allocation2 + $0xb0] sm:$0xff]
    %v331 = vld [vmem:[#allocation2 + $0xc0] sm:$0xff]
    %v332 = vld [vmem:[#allocation2 + $0xd0] sm:$0xff]
    %v333 = vld [vmem:[#allocation2 + $0xe0] sm:$0xff]
    %v334 = vld [vmem:[#allocation2 + $0xf0] sm:$0xff]
    %v335 = vld [vmem:[%s3] sm:$0xff]
    %v336 = vld [vmem:[%s3 + $0x8] sm:$0xff]
    %v337 = vld [vmem:[%s3 + $0x10] sm:$0xff]
    %v338 = vld [vmem:[%s3 + $0x18] sm:$0xff]
    %v339 = vld [vmem:[%s3 + $0x20] sm:$0xff]
    %v340 = vld [vmem:[%s3 + $0x28] sm:$0xff]
    %v341 = vld [vmem:[%s3 + $0x30] sm:$0xff]
    %v342 = vld [vmem:[%s3 + $0x38] sm:$0xff]
    %v343 = vld [vmem:[%s3 + $0x40] sm:$0xff]
    %v344 = vld [vmem:[%s3 + $0x48] sm:$0xff]
    %v345 = vld [vmem:[%s3 + $0x50] sm:$0xff]
    %v346 = vld [vmem:[%s3 + $0x58] sm:$0xff]
    %v347 = vld [vmem:[%s3 + $0x60] sm:$0xff]
    %v348 = vld [vmem:[%s3 + $0x68] sm:$0xff]
    %v349 = vld [vmem:[%s3 + $0x70] sm:$0xff]
    %v350 = vld [vmem:[%s3 + $0x78] sm:$0xff]
    %352 = vset.pattern.permute.xlu0 0
    %353 = vperm.xlu0 %352, %v335
    %v354 = vpop.permute.xlu0 %353
    %357 = vset.pattern.permute.xlu0 0
    %358 = vperm.xlu0 %357, %v336
    %v359 = vpop.permute.xlu0 %358
    %362 = vset.pattern.permute.xlu0 0
    %363 = vperm.xlu0 %362, %v337
    %v364 = vpop.permute.xlu0 %363
    %367 = vset.pattern.permute.xlu0 0
    %368 = vperm.xlu0 %367, %v338
    %v369 = vpop.permute.xlu0 %368
    %372 = vset.pattern.permute.xlu0 0
    %373 = vperm.xlu0 %372, %v339
    %v374 = vpop.permute.xlu0 %373
    %377 = vset.pattern.permute.xlu0 0
    %378 = vperm.xlu0 %377, %v340
    %v379 = vpop.permute.xlu0 %378
    %382 = vset.pattern.permute.xlu0 0
    %383 = vperm.xlu0 %382, %v341
    %v384 = vpop.permute.xlu0 %383
    %387 = vset.pattern.permute.xlu0 0
    %388 = vperm.xlu0 %387, %v342
    %v389 = vpop.permute.xlu0 %388
    %392 = vset.pattern.permute.xlu0 0
    %393 = vperm.xlu0 %392, %v343
    %v394 = vpop.permute.xlu0 %393
    %397 = vset.pattern.permute.xlu0 0
    %398 = vperm.xlu0 %397, %v344
    %v399 = vpop.permute.xlu0 %398
    %402 = vset.pattern.permute.xlu0 0
    %403 = vperm.xlu0 %402, %v345
    %v404 = vpop.permute.xlu0 %403
    %407 = vset.pattern.permute.xlu0 0
    %408 = vperm.xlu0 %407, %v346
    %v409 = vpop.permute.xlu0 %408
    %412 = vset.pattern.permute.xlu0 0
    %413 = vperm.xlu0 %412, %v347
    %v414 = vpop.permute.xlu0 %413
    %417 = vset.pattern.permute.xlu0 0
    %418 = vperm.xlu0 %417, %v348
    %v419 = vpop.permute.xlu0 %418
    %422 = vset.pattern.permute.xlu0 0
    %423 = vperm.xlu0 %422, %v349
    %v424 = vpop.permute.xlu0 %423
    %427 = vset.pattern.permute.xlu0 0
    %428 = vperm.xlu0 %427, %v350
    %v429 = vpop.permute.xlu0 %428
    %v431 = vmul.f32 %v319, %v354
    %v432 = vmul.f32 %v320, %v359
    %v433 = vmul.f32 %v321, %v364
    %v434 = vmul.f32 %v322, %v369
    %v435 = vmul.f32 %v323, %v374
    %v436 = vmul.f32 %v324, %v379
    %v437 = vmul.f32 %v325, %v384
    %v438 = vmul.f32 %v326, %v389
    %v439 = vmul.f32 %v327, %v394
    %v440 = vmul.f32 %v328, %v399
    %v441 = vmul.f32 %v329, %v404
    %v442 = vmul.f32 %v330, %v409
    %v443 = vmul.f32 %v331, %v414
    %v444 = vmul.f32 %v332, %v419
    %v445 = vmul.f32 %v333, %v424
    %v446 = vmul.f32 %v334, %v429
    %447 = vst [vmem:[#allocation2] sm:$0xff] %v431
    %448 = vst [vmem:[#allocation2 + $0x10] sm:$0xff] %v432
    %449 = vst [vmem:[#allocation2 + $0x20] sm:$0xff] %v433
    %450 = vst [vmem:[#allocation2 + $0x30] sm:$0xff] %v434
    %451 = vst [vmem:[#allocation2 + $0x40] sm:$0xff] %v435
    %452 = vst [vmem:[#allocation2 + $0x50] sm:$0xff] %v436
    %453 = vst [vmem:[#allocation2 + $0x60] sm:$0xff] %v437
    %454 = vst [vmem:[#allocation2 + $0x70] sm:$0xff] %v438
    %455 = vst [vmem:[#allocation2 + $0x80] sm:$0xff] %v439
    %456 = vst [vmem:[#allocation2 + $0x90] sm:$0xff] %v440
    %457 = vst [vmem:[#allocation2 + $0xa0] sm:$0xff] %v441
    %458 = vst [vmem:[#allocation2 + $0xb0] sm:$0xff] %v442
    %459 = vst [vmem:[#allocation2 + $0xc0] sm:$0xff] %v443
    %460 = vst [vmem:[#allocation2 + $0xd0] sm:$0xff] %v444
    %461 = vst [vmem:[#allocation2 + $0xe0] sm:$0xff] %v445
    %462 = vst [vmem:[#allocation2 + $0xf0] sm:$0xff] %v446
    %v463 = vld [vmem:[#allocation2] sm:$0xff]
    %v464 = vld [vmem:[#allocation2 + $0x8] sm:$0xff]
    %v465 = vld [vmem:[#allocation2 + $0x10] sm:$0xff]
    %v466 = vld [vmem:[#allocation2 + $0x18] sm:$0xff]
    %v467 = vld [vmem:[#allocation2 + $0x20] sm:$0xff]
    %v468 = vld [vmem:[#allocation2 + $0x28] sm:$0xff]
    %v469 = vld [vmem:[#allocation2 + $0x30] sm:$0xff]
    %v470 = vld [vmem:[#allocation2 + $0x38] sm:$0xff]
    %v471 = vld [vmem:[#allocation2 + $0x40] sm:$0xff]
    %v472 = vld [vmem:[#allocation2 + $0x48] sm:$0xff]
    %v473 = vld [vmem:[#allocation2 + $0x50] sm:$0xff]
    %v474 = vld [vmem:[#allocation2 + $0x58] sm:$0xff]
    %v475 = vld [vmem:[#allocation2 + $0x60] sm:$0xff]
    %v476 = vld [vmem:[#allocation2 + $0x68] sm:$0xff]
    %v477 = vld [vmem:[#allocation2 + $0x70] sm:$0xff]
    %v478 = vld [vmem:[#allocation2 + $0x78] sm:$0xff]
    %v479 = vld [vmem:[#allocation2 + $0x80] sm:$0xff]
    %v480 = vld [vmem:[#allocation2 + $0x88] sm:$0xff]
    %v481 = vld [vmem:[#allocation2 + $0x90] sm:$0xff]
    %v482 = vld [vmem:[#allocation2 + $0x98] sm:$0xff]
    %v483 = vld [vmem:[#allocation2 + $0xa0] sm:$0xff]
    %v484 = vld [vmem:[#allocation2 + $0xa8] sm:$0xff]
    %v485 = vld [vmem:[#allocation2 + $0xb0] sm:$0xff]
    %v486 = vld [vmem:[#allocation2 + $0xb8] sm:$0xff]
    %v487 = vld [vmem:[#allocation2 + $0xc0] sm:$0xff]
    %v488 = vld [vmem:[#allocation2 + $0xc8] sm:$0xff]
    %v489 = vld [vmem:[#allocation2 + $0xd0] sm:$0xff]
    %v490 = vld [vmem:[#allocation2 + $0xd8] sm:$0xff]
    %v491 = vld [vmem:[#allocation2 + $0xe0] sm:$0xff]
    %v492 = vld [vmem:[#allocation2 + $0xe8] sm:$0xff]
    %v493 = vld [vmem:[#allocation2 + $0xf0] sm:$0xff]
    %v494 = vld [vmem:[#allocation2 + $0xf8] sm:$0xff]
    %v495 = vpack.c.bf16 %v465, %v463
    %v496 = vpack.c.bf16 %v466, %v464
    %v497 = vpack.c.bf16 %v469, %v467
    %v498 = vpack.c.bf16 %v470, %v468
    %v499 = vpack.c.bf16 %v473, %v471
    %v500 = vpack.c.bf16 %v474, %v472
    %v501 = vpack.c.bf16 %v477, %v475
    %v502 = vpack.c.bf16 %v478, %v476
    %v503 = vpack.c.bf16 %v481, %v479
    %v504 = vpack.c.bf16 %v482, %v480
    %v505 = vpack.c.bf16 %v485, %v483
    %v506 = vpack.c.bf16 %v486, %v484
    %v507 = vpack.c.bf16 %v489, %v487
    %v508 = vpack.c.bf16 %v490, %v488
    %v509 = vpack.c.bf16 %v493, %v491
    %v510 = vpack.c.bf16 %v494, %v492
    %v511 = vld [vmem:[%s4] sm:$0xf]
    %v512 = vld [vmem:[%s4 + $0x4] sm:$0xf]
    %v513 = vld [vmem:[%s4 + $0x8] sm:$0xf]
    %v514 = vld [vmem:[%s4 + $0xc] sm:$0xf]
    %v515 = vld [vmem:[%s4 + $0x10] sm:$0xf]
    %v516 = vld [vmem:[%s4 + $0x14] sm:$0xf]
    %v517 = vld [vmem:[%s4 + $0x18] sm:$0xf]
    %v518 = vld [vmem:[%s4 + $0x1c] sm:$0xf]
    %v519 = vld [vmem:[%s4 + $0x20] sm:$0xf]
    %v520 = vld [vmem:[%s4 + $0x24] sm:$0xf]
    %v521 = vld [vmem:[%s4 + $0x28] sm:$0xf]
    %v522 = vld [vmem:[%s4 + $0x2c] sm:$0xf]
    %v523 = vld [vmem:[%s4 + $0x30] sm:$0xf]
    %v524 = vld [vmem:[%s4 + $0x34] sm:$0xf]
    %v525 = vld [vmem:[%s4 + $0x38] sm:$0xf]
    %v526 = vld [vmem:[%s4 + $0x3c] sm:$0xf]
    %v527 = vld [vmem:[%s4 + $0x40] sm:$0xf]
    %v528 = vld [vmem:[%s4 + $0x44] sm:$0xf]
    %v529 = vld [vmem:[%s4 + $0x48] sm:$0xf]
    %v530 = vld [vmem:[%s4 + $0x4c] sm:$0xf]
    %v531 = vld [vmem:[%s4 + $0x50] sm:$0xf]
    %v532 = vld [vmem:[%s4 + $0x54] sm:$0xf]
    %v533 = vld [vmem:[%s4 + $0x58] sm:$0xf]
    %v534 = vld [vmem:[%s4 + $0x5c] sm:$0xf]
    %v535 = vld [vmem:[%s4 + $0x60] sm:$0xf]
    %v536 = vld [vmem:[%s4 + $0x64] sm:$0xf]
    %v537 = vld [vmem:[%s4 + $0x68] sm:$0xf]
    %v538 = vld [vmem:[%s4 + $0x6c] sm:$0xf]
    %v539 = vld [vmem:[%s4 + $0x70] sm:$0xf]
    %v540 = vld [vmem:[%s4 + $0x74] sm:$0xf]
    %v541 = vld [vmem:[%s4 + $0x78] sm:$0xf]
    %v542 = vld [vmem:[%s4 + $0x7c] sm:$0xf]
    %v543 = vld [vmem:[%s5] sm:$0x1]
    %v545 = vperm.slane %v543, 0
    %v579 = vunpack.c.l.b16 %v511
    %v580 = vunpack.c.l.b16 %v512
    %v581 = vunpack.c.l.b16 %v513
    %v582 = vunpack.c.l.b16 %v514
    %v583 = vunpack.c.l.b16 %v515
    %v584 = vunpack.c.l.b16 %v516
    %v585 = vunpack.c.l.b16 %v517
    %v586 = vunpack.c.l.b16 %v518
    %v587 = vunpack.c.l.b16 %v519
    %v588 = vunpack.c.l.b16 %v520
    %v589 = vunpack.c.l.b16 %v521
    %v590 = vunpack.c.l.b16 %v522
    %v591 = vunpack.c.l.b16 %v523
    %v592 = vunpack.c.l.b16 %v524
    %v593 = vunpack.c.l.b16 %v525
    %v594 = vunpack.c.l.b16 %v526
    %v595 = vunpack.c.l.b16 %v527
    %v596 = vunpack.c.l.b16 %v528
    %v597 = vunpack.c.l.b16 %v529
    %v598 = vunpack.c.l.b16 %v530
    %v599 = vunpack.c.l.b16 %v531
    %v600 = vunpack.c.l.b16 %v532
    %v601 = vunpack.c.l.b16 %v533
    %v602 = vunpack.c.l.b16 %v534
    %v603 = vunpack.c.l.b16 %v535
    %v604 = vunpack.c.l.b16 %v536
    %v605 = vunpack.c.l.b16 %v537
    %v606 = vunpack.c.l.b16 %v538
    %v607 = vunpack.c.l.b16 %v539
    %v608 = vunpack.c.l.b16 %v540
    %v609 = vunpack.c.l.b16 %v541
    %v610 = vunpack.c.l.b16 %v542
    %v611 = vpack.c.b16 %v580, %v579
    %v612 = vpack.c.b16 %v582, %v581
    %v613 = vpack.c.b16 %v584, %v583
    %v614 = vpack.c.b16 %v586, %v585
    %v615 = vpack.c.b16 %v588, %v587
    %v616 = vpack.c.b16 %v590, %v589
    %v617 = vpack.c.b16 %v592, %v591
    %v618 = vpack.c.b16 %v594, %v593
    %v619 = vpack.c.b16 %v596, %v595
    %v620 = vpack.c.b16 %v598, %v597
    %v621 = vpack.c.b16 %v600, %v599
    %v622 = vpack.c.b16 %v602, %v601
    %v623 = vpack.c.b16 %v604, %v603
    %v624 = vpack.c.b16 %v606, %v605
    %v625 = vpack.c.b16 %v608, %v607
    %v626 = vpack.c.b16 %v610, %v609
    %643 = vmatpush.bf16.msra.mxu0 %v618
    %644 = vmatpush.bf16.msra.mxu0 %v617
    %645 = vmatpush.bf16.msra.mxu0 %v616
    %646 = vmatpush.bf16.msra.mxu0 %v615
    %647 = vmatpush.bf16.msra.mxu0 %v614
    %648 = vmatpush.bf16.msra.mxu0 %v613
    %649 = vmatpush.bf16.msra.mxu0 %v612
    %650 = vmatpush.bf16.msra.mxu0 %v611
    %651 = vmatmul.bf16.gmra.mxu0 %v495
    %v652 = vpop.f32.mrf.mxu0
    %v653 = vadd.f32 %v545, %v652
    %v654 = vpop.f32.mrf.mxu0
    %v655 = vadd.f32 %v545, %v654
    %656 = vmatmul.bf16.gmra.mxu0 %v497
    %v657 = vpop.f32.mrf.mxu0
    %v658 = vadd.f32 %v545, %v657
    %v659 = vpop.f32.mrf.mxu0
    %v660 = vadd.f32 %v545, %v659
    %661 = vmatmul.bf16.gmra.mxu0 %v499
    %v662 = vpop.f32.mrf.mxu0
    %v663 = vadd.f32 %v545, %v662
    %v664 = vpop.f32.mrf.mxu0
    %v665 = vadd.f32 %v545, %v664
    %666 = vmatmul.bf16.gmra.mxu0 %v501
    %v667 = vpop.f32.mrf.mxu0
    %v668 = vadd.f32 %v545, %v667
    %v669 = vpop.f32.mrf.mxu0
    %v670 = vadd.f32 %v545, %v669
    %671 = vmatmul.bf16.gmra.mxu0 %v503
    %v672 = vpop.f32.mrf.mxu0
    %v673 = vadd.f32 %v545, %v672
    %v674 = vpop.f32.mrf.mxu0
    %v675 = vadd.f32 %v545, %v674
    %676 = vmatmul.bf16.gmra.mxu0 %v505
    %v677 = vpop.f32.mrf.mxu0
    %v678 = vadd.f32 %v545, %v677
    %v679 = vpop.f32.mrf.mxu0
    %v680 = vadd.f32 %v545, %v679
    %681 = vmatmul.bf16.gmra.mxu0 %v507
    %v682 = vpop.f32.mrf.mxu0
    %v683 = vadd.f32 %v545, %v682
    %v684 = vpop.f32.mrf.mxu0
    %v685 = vadd.f32 %v545, %v684
    %686 = vmatmul.bf16.gmra.mxu0 %v509
    %v687 = vpop.f32.mrf.mxu0
    %v688 = vadd.f32 %v545, %v687
    %v689 = vpop.f32.mrf.mxu0
    %v690 = vadd.f32 %v545, %v689
    %691 = vdwg.mxu0
    %692 = vmatpush.bf16.msra.mxu0 %v626
    %693 = vmatpush.bf16.msra.mxu0 %v625
    %694 = vmatpush.bf16.msra.mxu0 %v624
    %695 = vmatpush.bf16.msra.mxu0 %v623
    %696 = vmatpush.bf16.msra.mxu0 %v622
    %697 = vmatpush.bf16.msra.mxu0 %v621
    %698 = vmatpush.bf16.msra.mxu0 %v620
    %699 = vmatpush.bf16.msra.mxu0 %v619
    %700 = vmatmul.bf16.gmra.mxu0 %v496
    %v701 = vpop.f32.mrf.mxu0
    %v702 = vadd.f32 %v653, %v701
    %v703 = vpop.f32.mrf.mxu0
    %v704 = vadd.f32 %v655, %v703
    %705 = vmatmul.bf16.gmra.mxu0 %v498
    %v706 = vpop.f32.mrf.mxu0
    %v707 = vadd.f32 %v658, %v706
    %v708 = vpop.f32.mrf.mxu0
    %v709 = vadd.f32 %v660, %v708
    %710 = vmatmul.bf16.gmra.mxu0 %v500
    %v711 = vpop.f32.mrf.mxu0
    %v712 = vadd.f32 %v663, %v711
    %v713 = vpop.f32.mrf.mxu0
    %v714 = vadd.f32 %v665, %v713
    %715 = vmatmul.bf16.gmra.mxu0 %v502
    %v716 = vpop.f32.mrf.mxu0
    %v717 = vadd.f32 %v668, %v716
    %v718 = vpop.f32.mrf.mxu0
    %v719 = vadd.f32 %v670, %v718
    %720 = vmatmul.bf16.gmra.mxu0 %v504
    %v721 = vpop.f32.mrf.mxu0
    %v722 = vadd.f32 %v673, %v721
    %v723 = vpop.f32.mrf.mxu0
    %v724 = vadd.f32 %v675, %v723
    %725 = vmatmul.bf16.gmra.mxu0 %v506
    %v726 = vpop.f32.mrf.mxu0
    %v727 = vadd.f32 %v678, %v726
    %v728 = vpop.f32.mrf.mxu0
    %v729 = vadd.f32 %v680, %v728
    %730 = vmatmul.bf16.gmra.mxu0 %v508
    %v731 = vpop.f32.mrf.mxu0
    %v732 = vadd.f32 %v683, %v731
    %v733 = vpop.f32.mrf.mxu0
    %v734 = vadd.f32 %v685, %v733
    %735 = vmatmul.bf16.gmra.mxu0 %v510
    %v736 = vpop.f32.mrf.mxu0
    %v737 = vadd.f32 %v688, %v736
    %v738 = vpop.f32.mrf.mxu0
    %v739 = vadd.f32 %v690, %v738
    %740 = vdwg.mxu0
    %741 = vst [vmem:[%s6] sm:$0xff] %v702
    %742 = vst [vmem:[%s6 + $0x8] sm:$0xff] %v704
    %743 = vst [vmem:[%s6 + $0x10] sm:$0xff] %v707
    %744 = vst [vmem:[%s6 + $0x18] sm:$0xff] %v709
    %745 = vst [vmem:[%s6 + $0x20] sm:$0xff] %v712
    %746 = vst [vmem:[%s6 + $0x28] sm:$0xff] %v714
    %747 = vst [vmem:[%s6 + $0x30] sm:$0xff] %v717
    %748 = vst [vmem:[%s6 + $0x38] sm:$0xff] %v719
    %749 = vst [vmem:[%s6 + $0x40] sm:$0xff] %v722
    %750 = vst [vmem:[%s6 + $0x48] sm:$0xff] %v724
    %751 = vst [vmem:[%s6 + $0x50] sm:$0xff] %v727
    %752 = vst [vmem:[%s6 + $0x58] sm:$0xff] %v729
    %753 = vst [vmem:[%s6 + $0x60] sm:$0xff] %v732
    %754 = vst [vmem:[%s6 + $0x68] sm:$0xff] %v734
    %755 = vst [vmem:[%s6 + $0x70] sm:$0xff] %v737
    %756 = vst [vmem:[%s6 + $0x78] sm:$0xff] %v739
  $region33: #{graph_sage_forward.3} parent=0 // pred_fallthru
    _
  // Predicated region
  $region34: #{graph_sage_forward.3} parent=0 // pred_check
    _
  $region35: #{graph_sage_forward.3} parent=0 // pred_check_branch
    %758 = sbr.rel (0) target = $region37
  $region36: #{graph_sage_forward.3} parent=0 // pred_region
    _
  $region37: #{graph_sage_forward.3} parent=0 // pred_fallthru
    _
  // Predicated region
  $region38: #{graph_sage_forward.3} parent=0 // pred_check
    _
  $region39: #{graph_sage_forward.3} parent=0 // pred_check_branch
    %760 = sbr.rel (0) target = $region41
  $region40: #{graph_sage_forward.3} parent=0 // pred_region
    _
  $region41: #{graph_sage_forward.3} parent=0 // pred_fallthru
    _

// kernel: graph_sage_forward.2
$region0: #{graph_sage_forward.2}
  #allocation0 [shape = 'u32[]', space=smem, size = 0x4, offset = 0x4, fixed_abs, tag = 'smem constant byte address 0x4 - core index']
  #allocation1 [shape = 'u32[72,128]{1,0:T(1,128)}', space=vmem, size = 0x9000, scoped, tag = 'internal scratch']
  #allocation2 [shape = 'f32[128,256]{1,0:T(8,128)}', space=vmem, size = 0x20000, scoped, tag = 'scratch operand']
  %s0 = inlined_call_operand.vmem [shape: bf16[128,128], index: 0, kind: input, shape index: {}]
  %s1 = inlined_call_operand.vmem [shape: bf16[128,128], index: 1, kind: input, shape index: {}, may-alias: {1,2}]
  %s2 = inlined_call_operand.vmem [shape: bf16[128,128], index: 2, kind: input, shape index: {}, may-alias: {1,2}]
  %s3 = inlined_call_operand.vmem [shape: f32[128,1], index: 3, kind: input, shape index: {}]
  %s4 = inlined_call_operand.vmem [shape: bf16[256,128], index: 4, kind: input, shape index: {}]
  %s5 = inlined_call_operand.vmem [shape: f32[1,128], index: 5, kind: input, shape index: {}]
  %s6 = inlined_call_operand.vmem [shape: bf16[128,128], index: 6, kind: output, shape index: {}]
  %s7 = sld [smem:[#allocation0]]
  $region42: #{graph_sage_forward.2} parent=0
    _
  %s9 = ssub.s32 1, %s7
  %s10 = scalar_select 0, %s9, %s7
  // Predicated region
  $region2: #{graph_sage_forward.2} parent=0 // pred_check
    _
  $region3: #{graph_sage_forward.2} parent=0 // pred_check_branch
    %12 = sbr.rel (0) target = $region5
  $region4: #{graph_sage_forward.2} parent=0 // pred_region
    _
  $region5: #{graph_sage_forward.2} parent=0 // pred_fallthru
    _
  // Predicated region
  $region6: #{graph_sage_forward.2} parent=0 // pred_check
    _
  $region7: #{graph_sage_forward.2} parent=0 // pred_check_branch
    %14 = sbr.rel (0) target = $region9
  $region8: #{graph_sage_forward.2} parent=0 // pred_region
    _
  $region9: #{graph_sage_forward.2} parent=0 // pred_fallthru
    _
  // Predicated region
  $region10: #{graph_sage_forward.2} parent=0 // pred_check
    _
  $region11: #{graph_sage_forward.2} parent=0 // pred_check_branch
    %16 = sbr.rel (0) target = $region13
  $region12: #{graph_sage_forward.2} parent=0 // pred_region
    _
  $region13: #{graph_sage_forward.2} parent=0 // pred_fallthru
    _
  // Predicated region
  $region14: #{graph_sage_forward.2} parent=0 // pred_check
    _
  $region15: #{graph_sage_forward.2} parent=0 // pred_check_branch
    %18 = sbr.rel (0) target = $region17
  $region16: #{graph_sage_forward.2} parent=0 // pred_region
    _
  $region17: #{graph_sage_forward.2} parent=0 // pred_fallthru
    _
  // Predicated region
  $region18: #{graph_sage_forward.2} parent=0 // pred_check
    _
  $region19: #{graph_sage_forward.2} parent=0 // pred_check_branch
    %20 = sbr.rel (0) target = $region21
  $region20: #{graph_sage_forward.2} parent=0 // pred_region
    _
  $region21: #{graph_sage_forward.2} parent=0 // pred_fallthru
    _
  // Predicated region
  $region22: #{graph_sage_forward.2} parent=0 // pred_check
    _
  $region23: #{graph_sage_forward.2} parent=0 // pred_check_branch
    %22 = sbr.rel (0) target = $region25
  $region24: #{graph_sage_forward.2} parent=0 // pred_region
    _
  $region25: #{graph_sage_forward.2} parent=0 // pred_fallthru
    _
  %p23 = scmp.eq.s32.totalorder 0, 0
  // Predicated region
  $region26: #{graph_sage_forward.2} parent=0 // pred_check
    %p24 = pneg %p23
  $region27: #{graph_sage_forward.2} parent=0 // pred_check_branch
    %26 = sbr.rel (%p24) target = $region29
  $region28: #{graph_sage_forward.2} parent=0 // pred_region
    %27 = vst [vmem:[#allocation2] sm:$0xff] 0.0
    %28 = vst [vmem:[#allocation2 + $0x10] sm:$0xff] 0.0
    %29 = vst [vmem:[#allocation2 + $0x20] sm:$0xff] 0.0
    %30 = vst [vmem:[#allocation2 + $0x30] sm:$0xff] 0.0
    %31 = vst [vmem:[#allocation2 + $0x40] sm:$0xff] 0.0
    %32 = vst [vmem:[#allocation2 + $0x50] sm:$0xff] 0.0
    %33 = vst [vmem:[#allocation2 + $0x60] sm:$0xff] 0.0
    %34 = vst [vmem:[#allocation2 + $0x70] sm:$0xff] 0.0
    %35 = vst [vmem:[#allocation2 + $0x80] sm:$0xff] 0.0
    %36 = vst [vmem:[#allocation2 + $0x90] sm:$0xff] 0.0
    %37 = vst [vmem:[#allocation2 + $0xa0] sm:$0xff] 0.0
    %38 = vst [vmem:[#allocation2 + $0xb0] sm:$0xff] 0.0
    %39 = vst [vmem:[#allocation2 + $0xc0] sm:$0xff] 0.0
    %40 = vst [vmem:[#allocation2 + $0xd0] sm:$0xff] 0.0
    %41 = vst [vmem:[#allocation2 + $0xe0] sm:$0xff] 0.0
    %42 = vst [vmem:[#allocation2 + $0xf0] sm:$0xff] 0.0
    %v43 = vld [vmem:[%s2] sm:$0xf]
    %v44 = vld [vmem:[%s2 + $0x4] sm:$0xf]
    %v45 = vld [vmem:[%s2 + $0x8] sm:$0xf]
    %v46 = vld [vmem:[%s2 + $0xc] sm:$0xf]
    %v47 = vld [vmem:[%s2 + $0x10] sm:$0xf]
    %v48 = vld [vmem:[%s2 + $0x14] sm:$0xf]
    %v49 = vld [vmem:[%s2 + $0x18] sm:$0xf]
    %v50 = vld [vmem:[%s2 + $0x1c] sm:$0xf]
    %v51 = vld [vmem:[%s2 + $0x20] sm:$0xf]
    %v52 = vld [vmem:[%s2 + $0x24] sm:$0xf]
    %v53 = vld [vmem:[%s2 + $0x28] sm:$0xf]
    %v54 = vld [vmem:[%s2 + $0x2c] sm:$0xf]
    %v55 = vld [vmem:[%s2 + $0x30] sm:$0xf]
    %v56 = vld [vmem:[%s2 + $0x34] sm:$0xf]
    %v57 = vld [vmem:[%s2 + $0x38] sm:$0xf]
    %v58 = vld [vmem:[%s2 + $0x3c] sm:$0xf]
    %v59 = vunpack.c.l.bf16 %v43
    %v60 = vunpack.c.l.bf16 %v44
    %v61 = vunpack.c.l.bf16 %v45
    %v62 = vunpack.c.l.bf16 %v46
    %v63 = vunpack.c.l.bf16 %v47
    %v64 = vunpack.c.l.bf16 %v48
    %v65 = vunpack.c.l.bf16 %v49
    %v66 = vunpack.c.l.bf16 %v50
    %v67 = vunpack.c.l.bf16 %v51
    %v68 = vunpack.c.l.bf16 %v52
    %v69 = vunpack.c.l.bf16 %v53
    %v70 = vunpack.c.l.bf16 %v54
    %v71 = vunpack.c.l.bf16 %v55
    %v72 = vunpack.c.l.bf16 %v56
    %v73 = vunpack.c.l.bf16 %v57
    %v74 = vunpack.c.l.bf16 %v58
    %75 = vst [vmem:[#allocation2 + $0x8] sm:$0xff] %v59
    %76 = vst [vmem:[#allocation2 + $0x18] sm:$0xff] %v60
    %77 = vst [vmem:[#allocation2 + $0x28] sm:$0xff] %v61
    %78 = vst [vmem:[#allocation2 + $0x38] sm:$0xff] %v62
    %79 = vst [vmem:[#allocation2 + $0x48] sm:$0xff] %v63
    %80 = vst [vmem:[#allocation2 + $0x58] sm:$0xff] %v64
    %81 = vst [vmem:[#allocation2 + $0x68] sm:$0xff] %v65
    %82 = vst [vmem:[#allocation2 + $0x78] sm:$0xff] %v66
    %83 = vst [vmem:[#allocation2 + $0x88] sm:$0xff] %v67
    %84 = vst [vmem:[#allocation2 + $0x98] sm:$0xff] %v68
    %85 = vst [vmem:[#allocation2 + $0xa8] sm:$0xff] %v69
    %86 = vst [vmem:[#allocation2 + $0xb8] sm:$0xff] %v70
    %87 = vst [vmem:[#allocation2 + $0xc8] sm:$0xff] %v71
    %88 = vst [vmem:[#allocation2 + $0xd8] sm:$0xff] %v72
    %89 = vst [vmem:[#allocation2 + $0xe8] sm:$0xff] %v73
    %90 = vst [vmem:[#allocation2 + $0xf8] sm:$0xff] %v74
  $region29: #{graph_sage_forward.2} parent=0 // pred_fallthru
    _
  %v91 = vld [vmem:[#allocation2] sm:$0xff]
  %v92 = vld [vmem:[#allocation2 + $0x10] sm:$0xff]
  %v93 = vld [vmem:[#allocation2 + $0x20] sm:$0xff]
  %v94 = vld [vmem:[#allocation2 + $0x30] sm:$0xff]
  %v95 = vld [vmem:[#allocation2 + $0x40] sm:$0xff]
  %v96 = vld [vmem:[#allocation2 + $0x50] sm:$0xff]
  %v97 = vld [vmem:[#allocation2 + $0x60] sm:$0xff]
  %v98 = vld [vmem:[#allocation2 + $0x70] sm:$0xff]
  %v99 = vld [vmem:[#allocation2 + $0x80] sm:$0xff]
  %v100 = vld [vmem:[#allocation2 + $0x90] sm:$0xff]
  %v101 = vld [vmem:[#allocation2 + $0xa0] sm:$0xff]
  %v102 = vld [vmem:[#allocation2 + $0xb0] sm:$0xff]
  %v103 = vld [vmem:[#allocation2 + $0xc0] sm:$0xff]
  %v104 = vld [vmem:[#allocation2 + $0xd0] sm:$0xff]
  %v105 = vld [vmem:[#allocation2 + $0xe0] sm:$0xff]
  %v106 = vld [vmem:[#allocation2 + $0xf0] sm:$0xff]
  %v107 = vld [vmem:[%s0] sm:$0xf]
  %v108 = vld [vmem:[%s0 + $0x4] sm:$0xf]
  %v109 = vld [vmem:[%s0 + $0x8] sm:$0xf]
  %v110 = vld [vmem:[%s0 + $0xc] sm:$0xf]
  %v111 = vld [vmem:[%s0 + $0x10] sm:$0xf]
  %v112 = vld [vmem:[%s0 + $0x14] sm:$0xf]
  %v113 = vld [vmem:[%s0 + $0x18] sm:$0xf]
  %v114 = vld [vmem:[%s0 + $0x1c] sm:$0xf]
  %v115 = vld [vmem:[%s0 + $0x20] sm:$0xf]
  %v116 = vld [vmem:[%s0 + $0x24] sm:$0xf]
  %v117 = vld [vmem:[%s0 + $0x28] sm:$0xf]
  %v118 = vld [vmem:[%s0 + $0x2c] sm:$0xf]
  %v119 = vld [vmem:[%s0 + $0x30] sm:$0xf]
  %v120 = vld [vmem:[%s0 + $0x34] sm:$0xf]
  %v121 = vld [vmem:[%s0 + $0x38] sm:$0xf]
  %v122 = vld [vmem:[%s0 + $0x3c] sm:$0xf]
  %v123 = vld [vmem:[%s1] sm:$0xf]
  %v124 = vld [vmem:[%s1 + $0x4] sm:$0xf]
  %v125 = vld [vmem:[%s1 + $0x8] sm:$0xf]
  %v126 = vld [vmem:[%s1 + $0xc] sm:$0xf]
  %v127 = vld [vmem:[%s1 + $0x10] sm:$0xf]
  %v128 = vld [vmem:[%s1 + $0x14] sm:$0xf]
  %v129 = vld [vmem:[%s1 + $0x18] sm:$0xf]
  %v130 = vld [vmem:[%s1 + $0x1c] sm:$0xf]
  %v131 = vld [vmem:[%s1 + $0x20] sm:$0xf]
  %v132 = vld [vmem:[%s1 + $0x24] sm:$0xf]
  %v133 = vld [vmem:[%s1 + $0x28] sm:$0xf]
  %v134 = vld [vmem:[%s1 + $0x2c] sm:$0xf]
  %v135 = vld [vmem:[%s1 + $0x30] sm:$0xf]
  %v136 = vld [vmem:[%s1 + $0x34] sm:$0xf]
  %v137 = vld [vmem:[%s1 + $0x38] sm:$0xf]
  %v138 = vld [vmem:[%s1 + $0x3c] sm:$0xf]
  %v155 = vunpack.c.l.b16 %v107
  %v156 = vunpack.c.l.b16 %v108
  %v157 = vunpack.c.l.b16 %v109
  %v158 = vunpack.c.l.b16 %v110
  %v159 = vunpack.c.l.b16 %v111
  %v160 = vunpack.c.l.b16 %v112
  %v161 = vunpack.c.l.b16 %v113
  %v162 = vunpack.c.l.b16 %v114
  %v163 = vunpack.c.l.b16 %v115
  %v164 = vunpack.c.l.b16 %v116
  %v165 = vunpack.c.l.b16 %v117
  %v166 = vunpack.c.l.b16 %v118
  %v167 = vunpack.c.l.b16 %v119
  %v168 = vunpack.c.l.b16 %v120
  %v169 = vunpack.c.l.b16 %v121
  %v170 = vunpack.c.l.b16 %v122
  %v171 = vpack.c.b16 %v156, %v155
  %v172 = vpack.c.b16 %v158, %v157
  %v173 = vpack.c.b16 %v160, %v159
  %v174 = vpack.c.b16 %v162, %v161
  %v175 = vpack.c.b16 %v164, %v163
  %v176 = vpack.c.b16 %v166, %v165
  %v177 = vpack.c.b16 %v168, %v167
  %v178 = vpack.c.b16 %v170, %v169
  %v203 = vunpack.c.l.b16 %v123
  %v204 = vunpack.c.l.b16 %v124
  %v205 = vunpack.c.l.b16 %v125
  %v206 = vunpack.c.l.b16 %v126
  %v207 = vunpack.c.l.b16 %v127
  %v208 = vunpack.c.l.b16 %v128
  %v209 = vunpack.c.l.b16 %v129
  %v210 = vunpack.c.l.b16 %v130
  %v211 = vunpack.c.l.b16 %v131
  %v212 = vunpack.c.l.b16 %v132
  %v213 = vunpack.c.l.b16 %v133
  %v214 = vunpack.c.l.b16 %v134
  %v215 = vunpack.c.l.b16 %v135
  %v216 = vunpack.c.l.b16 %v136
  %v217 = vunpack.c.l.b16 %v137
  %v218 = vunpack.c.l.b16 %v138
  %v219 = vpack.c.b16 %v204, %v203
  %v220 = vpack.c.b16 %v206, %v205
  %v221 = vpack.c.b16 %v208, %v207
  %v222 = vpack.c.b16 %v210, %v209
  %v223 = vpack.c.b16 %v212, %v211
  %v224 = vpack.c.b16 %v214, %v213
  %v225 = vpack.c.b16 %v216, %v215
  %v226 = vpack.c.b16 %v218, %v217
  %235 = vmatpush.bf16.msra.mxu0 %v226
  %236 = vmatpush.bf16.msra.mxu0 %v225
  %237 = vmatpush.bf16.msra.mxu0 %v224
  %238 = vmatpush.bf16.msra.mxu0 %v223
  %239 = vmatpush.bf16.msra.mxu0 %v222
  %240 = vmatpush.bf16.msra.mxu0 %v221
  %241 = vmatpush.bf16.msra.mxu0 %v220
  %242 = vmatpush.bf16.msra.mxu0 %v219
  %243 = vmatmul.bf16.gmra.mxu0 %v171
  %v244 = vpop.f32.mrf.mxu0
  %v245 = vadd.f32 0.0, %v244
  %v246 = vpop.f32.mrf.mxu0
  %v247 = vadd.f32 0.0, %v246
  %248 = vmatmul.bf16.gmra.mxu0 %v172
  %v249 = vpop.f32.mrf.mxu0
  %v250 = vadd.f32 0.0, %v249
  %v251 = vpop.f32.mrf.mxu0
  %v252 = vadd.f32 0.0, %v251
  %253 = vmatmul.bf16.gmra.mxu0 %v173
  %v254 = vpop.f32.mrf.mxu0
  %v255 = vadd.f32 0.0, %v254
  %v256 = vpop.f32.mrf.mxu0
  %v257 = vadd.f32 0.0, %v256
  %258 = vmatmul.bf16.gmra.mxu0 %v174
  %v259 = vpop.f32.mrf.mxu0
  %v260 = vadd.f32 0.0, %v259
  %v261 = vpop.f32.mrf.mxu0
  %v262 = vadd.f32 0.0, %v261
  %263 = vmatmul.bf16.gmra.mxu0 %v175
  %v264 = vpop.f32.mrf.mxu0
  %v265 = vadd.f32 0.0, %v264
  %v266 = vpop.f32.mrf.mxu0
  %v267 = vadd.f32 0.0, %v266
  %268 = vmatmul.bf16.gmra.mxu0 %v176
  %v269 = vpop.f32.mrf.mxu0
  %v270 = vadd.f32 0.0, %v269
  %v271 = vpop.f32.mrf.mxu0
  %v272 = vadd.f32 0.0, %v271
  %273 = vmatmul.bf16.gmra.mxu0 %v177
  %v274 = vpop.f32.mrf.mxu0
  %v275 = vadd.f32 0.0, %v274
  %v276 = vpop.f32.mrf.mxu0
  %v277 = vadd.f32 0.0, %v276
  %278 = vmatmul.bf16.gmra.mxu0 %v178
  %v279 = vpop.f32.mrf.mxu0
  %v280 = vadd.f32 0.0, %v279
  %v281 = vpop.f32.mrf.mxu0
  %v282 = vadd.f32 0.0, %v281
  %283 = vdwg.mxu0
  %v284 = vadd.f32 %v91, %v245
  %v285 = vadd.f32 %v92, %v247
  %v286 = vadd.f32 %v93, %v250
  %v287 = vadd.f32 %v94, %v252
  %v288 = vadd.f32 %v95, %v255
  %v289 = vadd.f32 %v96, %v257
  %v290 = vadd.f32 %v97, %v260
  %v291 = vadd.f32 %v98, %v262
  %v292 = vadd.f32 %v99, %v265
  %v293 = vadd.f32 %v100, %v267
  %v294 = vadd.f32 %v101, %v270
  %v295 = vadd.f32 %v102, %v272
  %v296 = vadd.f32 %v103, %v275
  %v297 = vadd.f32 %v104, %v277
  %v298 = vadd.f32 %v105, %v280
  %v299 = vadd.f32 %v106, %v282
  %300 = vst [vmem:[#allocation2] sm:$0xff] %v284
  %301 = vst [vmem:[#allocation2 + $0x10] sm:$0xff] %v285
  %302 = vst [vmem:[#allocation2 + $0x20] sm:$0xff] %v286
  %303 = vst [vmem:[#allocation2 + $0x30] sm:$0xff] %v287
  %304 = vst [vmem:[#allocation2 + $0x40] sm:$0xff] %v288
  %305 = vst [vmem:[#allocation2 + $0x50] sm:$0xff] %v289
  %306 = vst [vmem:[#allocation2 + $0x60] sm:$0xff] %v290
  %307 = vst [vmem:[#allocation2 + $0x70] sm:$0xff] %v291
  %308 = vst [vmem:[#allocation2 + $0x80] sm:$0xff] %v292
  %309 = vst [vmem:[#allocation2 + $0x90] sm:$0xff] %v293
  %310 = vst [vmem:[#allocation2 + $0xa0] sm:$0xff] %v294
  %311 = vst [vmem:[#allocation2 + $0xb0] sm:$0xff] %v295
  %312 = vst [vmem:[#allocation2 + $0xc0] sm:$0xff] %v296
  %313 = vst [vmem:[#allocation2 + $0xd0] sm:$0xff] %v297
  %314 = vst [vmem:[#allocation2 + $0xe0] sm:$0xff] %v298
  %315 = vst [vmem:[#allocation2 + $0xf0] sm:$0xff] %v299
  // Predicated region
  $region30: #{graph_sage_forward.2} parent=0 // pred_check
    %p316 = pneg %p23
  $region31: #{graph_sage_forward.2} parent=0 // pred_check_branch
    %318 = sbr.rel (%p316) target = $region33
  $region32: #{graph_sage_forward.2} parent=0 // pred_region
    %v319 = vld [vmem:[#allocation2] sm:$0xff]
    %v320 = vld [vmem:[#allocation2 + $0x10] sm:$0xff]
    %v321 = vld [vmem:[#allocation2 + $0x20] sm:$0xff]
    %v322 = vld [vmem:[#allocation2 + $0x30] sm:$0xff]
    %v323 = vld [vmem:[#allocation2 + $0x40] sm:$0xff]
    %v324 = vld [vmem:[#allocation2 + $0x50] sm:$0xff]
    %v325 = vld [vmem:[#allocation2 + $0x60] sm:$0xff]
    %v326 = vld [vmem:[#allocation2 + $0x70] sm:$0xff]
    %v327 = vld [vmem:[#allocation2 + $0x80] sm:$0xff]
    %v328 = vld [vmem:[#allocation2 + $0x90] sm:$0xff]
    %v329 = vld [vmem:[#allocation2 + $0xa0] sm:$0xff]
    %v330 = vld [vmem:[#allocation2 + $0xb0] sm:$0xff]
    %v331 = vld [vmem:[#allocation2 + $0xc0] sm:$0xff]
    %v332 = vld [vmem:[#allocation2 + $0xd0] sm:$0xff]
    %v333 = vld [vmem:[#allocation2 + $0xe0] sm:$0xff]
    %v334 = vld [vmem:[#allocation2 + $0xf0] sm:$0xff]
    %v335 = vld [vmem:[%s3] sm:$0xff]
    %v336 = vld [vmem:[%s3 + $0x8] sm:$0xff]
    %v337 = vld [vmem:[%s3 + $0x10] sm:$0xff]
    %v338 = vld [vmem:[%s3 + $0x18] sm:$0xff]
    %v339 = vld [vmem:[%s3 + $0x20] sm:$0xff]
    %v340 = vld [vmem:[%s3 + $0x28] sm:$0xff]
    %v341 = vld [vmem:[%s3 + $0x30] sm:$0xff]
    %v342 = vld [vmem:[%s3 + $0x38] sm:$0xff]
    %v343 = vld [vmem:[%s3 + $0x40] sm:$0xff]
    %v344 = vld [vmem:[%s3 + $0x48] sm:$0xff]
    %v345 = vld [vmem:[%s3 + $0x50] sm:$0xff]
    %v346 = vld [vmem:[%s3 + $0x58] sm:$0xff]
    %v347 = vld [vmem:[%s3 + $0x60] sm:$0xff]
    %v348 = vld [vmem:[%s3 + $0x68] sm:$0xff]
    %v349 = vld [vmem:[%s3 + $0x70] sm:$0xff]
    %v350 = vld [vmem:[%s3 + $0x78] sm:$0xff]
    %352 = vset.pattern.permute.xlu0 0
    %353 = vperm.xlu0 %352, %v335
    %v354 = vpop.permute.xlu0 %353
    %357 = vset.pattern.permute.xlu0 0
    %358 = vperm.xlu0 %357, %v336
    %v359 = vpop.permute.xlu0 %358
    %362 = vset.pattern.permute.xlu0 0
    %363 = vperm.xlu0 %362, %v337
    %v364 = vpop.permute.xlu0 %363
    %367 = vset.pattern.permute.xlu0 0
    %368 = vperm.xlu0 %367, %v338
    %v369 = vpop.permute.xlu0 %368
    %372 = vset.pattern.permute.xlu0 0
    %373 = vperm.xlu0 %372, %v339
    %v374 = vpop.permute.xlu0 %373
    %377 = vset.pattern.permute.xlu0 0
    %378 = vperm.xlu0 %377, %v340
    %v379 = vpop.permute.xlu0 %378
    %382 = vset.pattern.permute.xlu0 0
    %383 = vperm.xlu0 %382, %v341
    %v384 = vpop.permute.xlu0 %383
    %387 = vset.pattern.permute.xlu0 0
    %388 = vperm.xlu0 %387, %v342
    %v389 = vpop.permute.xlu0 %388
    %392 = vset.pattern.permute.xlu0 0
    %393 = vperm.xlu0 %392, %v343
    %v394 = vpop.permute.xlu0 %393
    %397 = vset.pattern.permute.xlu0 0
    %398 = vperm.xlu0 %397, %v344
    %v399 = vpop.permute.xlu0 %398
    %402 = vset.pattern.permute.xlu0 0
    %403 = vperm.xlu0 %402, %v345
    %v404 = vpop.permute.xlu0 %403
    %407 = vset.pattern.permute.xlu0 0
    %408 = vperm.xlu0 %407, %v346
    %v409 = vpop.permute.xlu0 %408
    %412 = vset.pattern.permute.xlu0 0
    %413 = vperm.xlu0 %412, %v347
    %v414 = vpop.permute.xlu0 %413
    %417 = vset.pattern.permute.xlu0 0
    %418 = vperm.xlu0 %417, %v348
    %v419 = vpop.permute.xlu0 %418
    %422 = vset.pattern.permute.xlu0 0
    %423 = vperm.xlu0 %422, %v349
    %v424 = vpop.permute.xlu0 %423
    %427 = vset.pattern.permute.xlu0 0
    %428 = vperm.xlu0 %427, %v350
    %v429 = vpop.permute.xlu0 %428
    %v431 = vmul.f32 %v319, %v354
    %v432 = vmul.f32 %v320, %v359
    %v433 = vmul.f32 %v321, %v364
    %v434 = vmul.f32 %v322, %v369
    %v435 = vmul.f32 %v323, %v374
    %v436 = vmul.f32 %v324, %v379
    %v437 = vmul.f32 %v325, %v384
    %v438 = vmul.f32 %v326, %v389
    %v439 = vmul.f32 %v327, %v394
    %v440 = vmul.f32 %v328, %v399
    %v441 = vmul.f32 %v329, %v404
    %v442 = vmul.f32 %v330, %v409
    %v443 = vmul.f32 %v331, %v414
    %v444 = vmul.f32 %v332, %v419
    %v445 = vmul.f32 %v333, %v424
    %v446 = vmul.f32 %v334, %v429
    %447 = vst [vmem:[#allocation2] sm:$0xff] %v431
    %448 = vst [vmem:[#allocation2 + $0x10] sm:$0xff] %v432
    %449 = vst [vmem:[#allocation2 + $0x20] sm:$0xff] %v433
    %450 = vst [vmem:[#allocation2 + $0x30] sm:$0xff] %v434
    %451 = vst [vmem:[#allocation2 + $0x40] sm:$0xff] %v435
    %452 = vst [vmem:[#allocation2 + $0x50] sm:$0xff] %v436
    %453 = vst [vmem:[#allocation2 + $0x60] sm:$0xff] %v437
    %454 = vst [vmem:[#allocation2 + $0x70] sm:$0xff] %v438
    %455 = vst [vmem:[#allocation2 + $0x80] sm:$0xff] %v439
    %456 = vst [vmem:[#allocation2 + $0x90] sm:$0xff] %v440
    %457 = vst [vmem:[#allocation2 + $0xa0] sm:$0xff] %v441
    %458 = vst [vmem:[#allocation2 + $0xb0] sm:$0xff] %v442
    %459 = vst [vmem:[#allocation2 + $0xc0] sm:$0xff] %v443
    %460 = vst [vmem:[#allocation2 + $0xd0] sm:$0xff] %v444
    %461 = vst [vmem:[#allocation2 + $0xe0] sm:$0xff] %v445
    %462 = vst [vmem:[#allocation2 + $0xf0] sm:$0xff] %v446
    %v463 = vld [vmem:[#allocation2] sm:$0xff]
    %v464 = vld [vmem:[#allocation2 + $0x8] sm:$0xff]
    %v465 = vld [vmem:[#allocation2 + $0x10] sm:$0xff]
    %v466 = vld [vmem:[#allocation2 + $0x18] sm:$0xff]
    %v467 = vld [vmem:[#allocation2 + $0x20] sm:$0xff]
    %v468 = vld [vmem:[#allocation2 + $0x28] sm:$0xff]
    %v469 = vld [vmem:[#allocation2 + $0x30] sm:$0xff]
    %v470 = vld [vmem:[#allocation2 + $0x38] sm:$0xff]
    %v471 = vld [vmem:[#allocation2 + $0x40] sm:$0xff]
    %v472 = vld [vmem:[#allocation2 + $0x48] sm:$0xff]
    %v473 = vld [vmem:[#allocation2 + $0x50] sm:$0xff]
    %v474 = vld [vmem:[#allocation2 + $0x58] sm:$0xff]
    %v475 = vld [vmem:[#allocation2 + $0x60] sm:$0xff]
    %v476 = vld [vmem:[#allocation2 + $0x68] sm:$0xff]
    %v477 = vld [vmem:[#allocation2 + $0x70] sm:$0xff]
    %v478 = vld [vmem:[#allocation2 + $0x78] sm:$0xff]
    %v479 = vld [vmem:[#allocation2 + $0x80] sm:$0xff]
    %v480 = vld [vmem:[#allocation2 + $0x88] sm:$0xff]
    %v481 = vld [vmem:[#allocation2 + $0x90] sm:$0xff]
    %v482 = vld [vmem:[#allocation2 + $0x98] sm:$0xff]
    %v483 = vld [vmem:[#allocation2 + $0xa0] sm:$0xff]
    %v484 = vld [vmem:[#allocation2 + $0xa8] sm:$0xff]
    %v485 = vld [vmem:[#allocation2 + $0xb0] sm:$0xff]
    %v486 = vld [vmem:[#allocation2 + $0xb8] sm:$0xff]
    %v487 = vld [vmem:[#allocation2 + $0xc0] sm:$0xff]
    %v488 = vld [vmem:[#allocation2 + $0xc8] sm:$0xff]
    %v489 = vld [vmem:[#allocation2 + $0xd0] sm:$0xff]
    %v490 = vld [vmem:[#allocation2 + $0xd8] sm:$0xff]
    %v491 = vld [vmem:[#allocation2 + $0xe0] sm:$0xff]
    %v492 = vld [vmem:[#allocation2 + $0xe8] sm:$0xff]
    %v493 = vld [vmem:[#allocation2 + $0xf0] sm:$0xff]
    %v494 = vld [vmem:[#allocation2 + $0xf8] sm:$0xff]
    %v495 = vpack.c.bf16 %v465, %v463
    %v496 = vpack.c.bf16 %v466, %v464
    %v497 = vpack.c.bf16 %v469, %v467
    %v498 = vpack.c.bf16 %v470, %v468
    %v499 = vpack.c.bf16 %v473, %v471
    %v500 = vpack.c.bf16 %v474, %v472
    %v501 = vpack.c.bf16 %v477, %v475
    %v502 = vpack.c.bf16 %v478, %v476
    %v503 = vpack.c.bf16 %v481, %v479
    %v504 = vpack.c.bf16 %v482, %v480
    %v505 = vpack.c.bf16 %v485, %v483
    %v506 = vpack.c.bf16 %v486, %v484
    %v507 = vpack.c.bf16 %v489, %v487
    %v508 = vpack.c.bf16 %v490, %v488
    %v509 = vpack.c.bf16 %v493, %v491
    %v510 = vpack.c.bf16 %v494, %v492
    %v511 = vld [vmem:[%s4] sm:$0xf]
    %v512 = vld [vmem:[%s4 + $0x4] sm:$0xf]
    %v513 = vld [vmem:[%s4 + $0x8] sm:$0xf]
    %v514 = vld [vmem:[%s4 + $0xc] sm:$0xf]
    %v515 = vld [vmem:[%s4 + $0x10] sm:$0xf]
    %v516 = vld [vmem:[%s4 + $0x14] sm:$0xf]
    %v517 = vld [vmem:[%s4 + $0x18] sm:$0xf]
    %v518 = vld [vmem:[%s4 + $0x1c] sm:$0xf]
    %v519 = vld [vmem:[%s4 + $0x20] sm:$0xf]
    %v520 = vld [vmem:[%s4 + $0x24] sm:$0xf]
    %v521 = vld [vmem:[%s4 + $0x28] sm:$0xf]
    %v522 = vld [vmem:[%s4 + $0x2c] sm:$0xf]
    %v523 = vld [vmem:[%s4 + $0x30] sm:$0xf]
    %v524 = vld [vmem:[%s4 + $0x34] sm:$0xf]
    %v525 = vld [vmem:[%s4 + $0x38] sm:$0xf]
    %v526 = vld [vmem:[%s4 + $0x3c] sm:$0xf]
    %v527 = vld [vmem:[%s4 + $0x40] sm:$0xf]
    %v528 = vld [vmem:[%s4 + $0x44] sm:$0xf]
    %v529 = vld [vmem:[%s4 + $0x48] sm:$0xf]
    %v530 = vld [vmem:[%s4 + $0x4c] sm:$0xf]
    %v531 = vld [vmem:[%s4 + $0x50] sm:$0xf]
    %v532 = vld [vmem:[%s4 + $0x54] sm:$0xf]
    %v533 = vld [vmem:[%s4 + $0x58] sm:$0xf]
    %v534 = vld [vmem:[%s4 + $0x5c] sm:$0xf]
    %v535 = vld [vmem:[%s4 + $0x60] sm:$0xf]
    %v536 = vld [vmem:[%s4 + $0x64] sm:$0xf]
    %v537 = vld [vmem:[%s4 + $0x68] sm:$0xf]
    %v538 = vld [vmem:[%s4 + $0x6c] sm:$0xf]
    %v539 = vld [vmem:[%s4 + $0x70] sm:$0xf]
    %v540 = vld [vmem:[%s4 + $0x74] sm:$0xf]
    %v541 = vld [vmem:[%s4 + $0x78] sm:$0xf]
    %v542 = vld [vmem:[%s4 + $0x7c] sm:$0xf]
    %v543 = vld [vmem:[%s5] sm:$0x1]
    %v545 = vperm.slane %v543, 0
    %v579 = vunpack.c.l.b16 %v511
    %v580 = vunpack.c.l.b16 %v512
    %v581 = vunpack.c.l.b16 %v513
    %v582 = vunpack.c.l.b16 %v514
    %v583 = vunpack.c.l.b16 %v515
    %v584 = vunpack.c.l.b16 %v516
    %v585 = vunpack.c.l.b16 %v517
    %v586 = vunpack.c.l.b16 %v518
    %v587 = vunpack.c.l.b16 %v519
    %v588 = vunpack.c.l.b16 %v520
    %v589 = vunpack.c.l.b16 %v521
    %v590 = vunpack.c.l.b16 %v522
    %v591 = vunpack.c.l.b16 %v523
    %v592 = vunpack.c.l.b16 %v524
    %v593 = vunpack.c.l.b16 %v525
    %v594 = vunpack.c.l.b16 %v526
    %v595 = vunpack.c.l.b16 %v527
    %v596 = vunpack.c.l.b16 %v528
    %v597 = vunpack.c.l.b16 %v529
    %v598 = vunpack.c.l.b16 %v530
    %v599 = vunpack.c.l.b16 %v531
    %v600 = vunpack.c.l.b16 %v532
    %v601 = vunpack.c.l.b16 %v533
    %v602 = vunpack.c.l.b16 %v534
    %v603 = vunpack.c.l.b16 %v535
    %v604 = vunpack.c.l.b16 %v536
    %v605 = vunpack.c.l.b16 %v537
    %v606 = vunpack.c.l.b16 %v538
    %v607 = vunpack.c.l.b16 %v539
    %v608 = vunpack.c.l.b16 %v540
    %v609 = vunpack.c.l.b16 %v541
    %v610 = vunpack.c.l.b16 %v542
    %v611 = vpack.c.b16 %v580, %v579
    %v612 = vpack.c.b16 %v582, %v581
    %v613 = vpack.c.b16 %v584, %v583
    %v614 = vpack.c.b16 %v586, %v585
    %v615 = vpack.c.b16 %v588, %v587
    %v616 = vpack.c.b16 %v590, %v589
    %v617 = vpack.c.b16 %v592, %v591
    %v618 = vpack.c.b16 %v594, %v593
    %v619 = vpack.c.b16 %v596, %v595
    %v620 = vpack.c.b16 %v598, %v597
    %v621 = vpack.c.b16 %v600, %v599
    %v622 = vpack.c.b16 %v602, %v601
    %v623 = vpack.c.b16 %v604, %v603
    %v624 = vpack.c.b16 %v606, %v605
    %v625 = vpack.c.b16 %v608, %v607
    %v626 = vpack.c.b16 %v610, %v609
    %643 = vmatpush.bf16.msra.mxu0 %v618
    %644 = vmatpush.bf16.msra.mxu0 %v617
    %645 = vmatpush.bf16.msra.mxu0 %v616
    %646 = vmatpush.bf16.msra.mxu0 %v615
    %647 = vmatpush.bf16.msra.mxu0 %v614
    %648 = vmatpush.bf16.msra.mxu0 %v613
    %649 = vmatpush.bf16.msra.mxu0 %v612
    %650 = vmatpush.bf16.msra.mxu0 %v611
    %651 = vmatmul.bf16.gmra.mxu0 %v495
    %v652 = vpop.f32.mrf.mxu0
    %v653 = vadd.f32 %v545, %v652
    %v654 = vpop.f32.mrf.mxu0
    %v655 = vadd.f32 %v545, %v654
    %656 = vmatmul.bf16.gmra.mxu0 %v497
    %v657 = vpop.f32.mrf.mxu0
    %v658 = vadd.f32 %v545, %v657
    %v659 = vpop.f32.mrf.mxu0
    %v660 = vadd.f32 %v545, %v659
    %661 = vmatmul.bf16.gmra.mxu0 %v499
    %v662 = vpop.f32.mrf.mxu0
    %v663 = vadd.f32 %v545, %v662
    %v664 = vpop.f32.mrf.mxu0
    %v665 = vadd.f32 %v545, %v664
    %666 = vmatmul.bf16.gmra.mxu0 %v501
    %v667 = vpop.f32.mrf.mxu0
    %v668 = vadd.f32 %v545, %v667
    %v669 = vpop.f32.mrf.mxu0
    %v670 = vadd.f32 %v545, %v669
    %671 = vmatmul.bf16.gmra.mxu0 %v503
    %v672 = vpop.f32.mrf.mxu0
    %v673 = vadd.f32 %v545, %v672
    %v674 = vpop.f32.mrf.mxu0
    %v675 = vadd.f32 %v545, %v674
    %676 = vmatmul.bf16.gmra.mxu0 %v505
    %v677 = vpop.f32.mrf.mxu0
    %v678 = vadd.f32 %v545, %v677
    %v679 = vpop.f32.mrf.mxu0
    %v680 = vadd.f32 %v545, %v679
    %681 = vmatmul.bf16.gmra.mxu0 %v507
    %v682 = vpop.f32.mrf.mxu0
    %v683 = vadd.f32 %v545, %v682
    %v684 = vpop.f32.mrf.mxu0
    %v685 = vadd.f32 %v545, %v684
    %686 = vmatmul.bf16.gmra.mxu0 %v509
    %v687 = vpop.f32.mrf.mxu0
    %v688 = vadd.f32 %v545, %v687
    %v689 = vpop.f32.mrf.mxu0
    %v690 = vadd.f32 %v545, %v689
    %691 = vdwg.mxu0
    %692 = vmatpush.bf16.msra.mxu0 %v626
    %693 = vmatpush.bf16.msra.mxu0 %v625
    %694 = vmatpush.bf16.msra.mxu0 %v624
    %695 = vmatpush.bf16.msra.mxu0 %v623
    %696 = vmatpush.bf16.msra.mxu0 %v622
    %697 = vmatpush.bf16.msra.mxu0 %v621
    %698 = vmatpush.bf16.msra.mxu0 %v620
    %699 = vmatpush.bf16.msra.mxu0 %v619
    %700 = vmatmul.bf16.gmra.mxu0 %v496
    %v701 = vpop.f32.mrf.mxu0
    %v702 = vadd.f32 %v653, %v701
    %v703 = vpop.f32.mrf.mxu0
    %v704 = vadd.f32 %v655, %v703
    %705 = vmatmul.bf16.gmra.mxu0 %v498
    %v706 = vpop.f32.mrf.mxu0
    %v707 = vadd.f32 %v658, %v706
    %v708 = vpop.f32.mrf.mxu0
    %v709 = vadd.f32 %v660, %v708
    %710 = vmatmul.bf16.gmra.mxu0 %v500
    %v711 = vpop.f32.mrf.mxu0
    %v712 = vadd.f32 %v663, %v711
    %v713 = vpop.f32.mrf.mxu0
    %v714 = vadd.f32 %v665, %v713
    %715 = vmatmul.bf16.gmra.mxu0 %v502
    %v716 = vpop.f32.mrf.mxu0
    %v717 = vadd.f32 %v668, %v716
    %v718 = vpop.f32.mrf.mxu0
    %v719 = vadd.f32 %v670, %v718
    %720 = vmatmul.bf16.gmra.mxu0 %v504
    %v721 = vpop.f32.mrf.mxu0
    %v722 = vadd.f32 %v673, %v721
    %v723 = vpop.f32.mrf.mxu0
    %v724 = vadd.f32 %v675, %v723
    %725 = vmatmul.bf16.gmra.mxu0 %v506
    %v726 = vpop.f32.mrf.mxu0
    %v727 = vadd.f32 %v678, %v726
    %v728 = vpop.f32.mrf.mxu0
    %v729 = vadd.f32 %v680, %v728
    %730 = vmatmul.bf16.gmra.mxu0 %v508
    %v731 = vpop.f32.mrf.mxu0
    %v732 = vadd.f32 %v683, %v731
    %v733 = vpop.f32.mrf.mxu0
    %v734 = vadd.f32 %v685, %v733
    %735 = vmatmul.bf16.gmra.mxu0 %v510
    %v736 = vpop.f32.mrf.mxu0
    %v737 = vadd.f32 %v688, %v736
    %v738 = vpop.f32.mrf.mxu0
    %v739 = vadd.f32 %v690, %v738
    %740 = vdwg.mxu0
    %v741 = vmax.f32 %v702, 0.0
    %v742 = vmax.f32 %v704, 0.0
    %v743 = vmax.f32 %v707, 0.0
    %v744 = vmax.f32 %v709, 0.0
    %v745 = vmax.f32 %v712, 0.0
    %v746 = vmax.f32 %v714, 0.0
    %v747 = vmax.f32 %v717, 0.0
    %v748 = vmax.f32 %v719, 0.0
    %v749 = vmax.f32 %v722, 0.0
    %v750 = vmax.f32 %v724, 0.0
    %v751 = vmax.f32 %v727, 0.0
    %v752 = vmax.f32 %v729, 0.0
    %v753 = vmax.f32 %v732, 0.0
    %v754 = vmax.f32 %v734, 0.0
    %v755 = vmax.f32 %v737, 0.0
    %v756 = vmax.f32 %v739, 0.0
    %v757 = vpack.c.bf16 %v741, %v741
    %v758 = vpack.c.bf16 %v742, %v742
    %v759 = vpack.c.bf16 %v743, %v743
    %v760 = vpack.c.bf16 %v744, %v744
    %v761 = vpack.c.bf16 %v745, %v745
    %v762 = vpack.c.bf16 %v746, %v746
    %v763 = vpack.c.bf16 %v747, %v747
    %v764 = vpack.c.bf16 %v748, %v748
    %v765 = vpack.c.bf16 %v749, %v749
    %v766 = vpack.c.bf16 %v750, %v750
    %v767 = vpack.c.bf16 %v751, %v751
    %v768 = vpack.c.bf16 %v752, %v752
    %v769 = vpack.c.bf16 %v753, %v753
    %v770 = vpack.c.bf16 %v754, %v754
    %v771 = vpack.c.bf16 %v755, %v755
    %v772 = vpack.c.bf16 %v756, %v756
    %773 = vst [vmem:[%s6] sm:$0xf] %v757
    %774 = vst [vmem:[%s6 + $0x4] sm:$0xf] %v758
    %775 = vst [vmem:[%s6 + $0x8] sm:$0xf] %v759
    %776 = vst [vmem:[%s6 + $0xc] sm:$0xf] %v760
    %777 = vst [vmem:[%s6 + $0x10] sm:$0xf] %v761
    %778 = vst [vmem:[%s6 + $0x14] sm:$0xf] %v762
    %779 = vst [vmem:[%s6 + $0x18] sm:$0xf] %v763
    %780 = vst [vmem:[%s6 + $0x1c] sm:$0xf] %v764
    %781 = vst [vmem:[%s6 + $0x20] sm:$0xf] %v765
    %782 = vst [vmem:[%s6 + $0x24] sm:$0xf] %v766
    %783 = vst [vmem:[%s6 + $0x28] sm:$0xf] %v767
    %784 = vst [vmem:[%s6 + $0x2c] sm:$0xf] %v768
    %785 = vst [vmem:[%s6 + $0x30] sm:$0xf] %v769
    %786 = vst [vmem:[%s6 + $0x34] sm:$0xf] %v770
    %787 = vst [vmem:[%s6 + $0x38] sm:$0xf] %v771
    %788 = vst [vmem:[%s6 + $0x3c] sm:$0xf] %v772
  $region33: #{graph_sage_forward.2} parent=0 // pred_fallthru
    _
  // Predicated region
  $region34: #{graph_sage_forward.2} parent=0 // pred_check
    _
  $region35: #{graph_sage_forward.2} parent=0 // pred_check_branch
    %790 = sbr.rel (0) target = $region37
  $region36: #{graph_sage_forward.2} parent=0 // pred_region
    _
  $region37: #{graph_sage_forward.2} parent=0 // pred_fallthru
    _
  // Predicated region
  $region38: #{graph_sage_forward.2} parent=0 // pred_check
    _
  $region39: #{graph_sage_forward.2} parent=0 // pred_check_branch
    %792 = sbr.rel (0) target = $region41
  $region40: #{graph_sage_forward.2} parent=0 // pred_region
    _
  $region41: #{graph_sage_forward.2} parent=0 // pred_fallthru
    _

</llo_original>
